<compile_context>
chip_gen: v7x
topology: tpu7x:2x2x1
jax: 0.10.0
libtpu: 0.0.40
codegen_flags: <defaults>
</compile_context>

<pallas_src>
import functools

import jax
import jax.numpy as jnp
from jax import lax
from jax.experimental import pallas as pl
from jax.experimental.pallas import tpu as pltpu


# ------------------------------ row-tiled Linear (+tanh) -----------------------------
def _linear_kernel(x_ref, w_ref, b_ref, o_ref, *, activation):
    y = jnp.dot(x_ref[...], w_ref[...], preferred_element_type=jnp.float32) + b_ref[...]
    if activation == "tanh":
        y = jnp.tanh(y)
    o_ref[...] = y


def linear(x2d, wT, b2, activation=None, row_tile=256):
    # x2d: (M, K); wT: (K, N) pre-transposed; b2: (1, N) pre-reshaped
    M, K = x2d.shape
    N = wT.shape[1]
    tm = row_tile if (M > row_tile and M % row_tile == 0) else M
    return pl.pallas_call(
        functools.partial(_linear_kernel, activation=activation),
        out_shape=jax.ShapeDtypeStruct((M, N), jnp.float32),
        grid_spec=pltpu.PrefetchScalarGridSpec(
            num_scalar_prefetch=0,
            grid=(M // tm,),
            in_specs=[pl.BlockSpec((tm, K), lambda i: (i, 0)),
                      pl.BlockSpec((K, N), lambda i: (0, 0)),
                      pl.BlockSpec((1, N), lambda i: (0, 0))],
            out_specs=pl.BlockSpec((tm, N), lambda i: (i, 0)),
        ),
        compiler_params=pltpu.CompilerParams(
            dimension_semantics=("parallel",),
            vmem_limit_bytes=32 * 1024 * 1024,
        ),
    )(x2d, wT, b2)


# --------------------------- fused Mamba residual layer ------------------------------
def _mamba_layer_kernel(h_ref, normw_ref, inpw_ref, convw_ref, convb_ref,
                        xpw_ref, xpb_ref, At_ref, Dp_ref, outw_ref,
                        o_ref,
                        xpad_scr, xc_scr, dlt_scr, b_scr, c_scr, y_scr,
                        *, L, D, ED, N, K, eps, unroll):
    # Block batch dim is always 1 (grid over batch), so rows are already time-ordered.
    h_res = h_ref[...].reshape(L, D)                                  # (L, D)

    # ---- RMSNorm ----
    ms = jnp.mean(h_res * h_res, axis=-1, keepdims=True)
    xn = h_res * lax.rsqrt(ms + eps) * normw_ref[...]

    # ---- in_proj: (L, D) @ (D, 2*ED) ----
    xz = jnp.dot(xn, inpw_ref[...], preferred_element_type=jnp.float32)
    z = xz[:, ED:]                                                    # gate branch

    # ---- causal depthwise conv1d + SiLU (pad lives in VMEM scratch) ----
    xpad_scr[:K - 1, :] = jnp.zeros((K - 1, ED), jnp.float32)
    xpad_scr[K - 1:, :] = xz[:, :ED]
    xp = xpad_scr[...]                                                # (L+K-1, ED)
    conv = convb_ref[...]                                             # (1, ED) -> bcast
    for k in range(K):                                                # K = d_conv = 4
        conv = conv + xp[k:k + L, :] * convw_ref[k:k + 1, :]
    xc = conv * pl.reciprocal(1.0 + jnp.exp(-conv), approx=True)      # SiLU

    # ---- x_proj with dt_proj folded in: (L, ED) @ (ED, ED+2N) + bias ----
    dbc = jnp.dot(xc, xpw_ref[...], preferred_element_type=jnp.float32) + xpb_ref[...]
    dpre = dbc[:, :ED]
    # softplus (stable form)
    delta = jnp.maximum(dpre, 0.0) + jnp.log(1.0 + jnp.exp(-jnp.abs(dpre)))

    # ---- stage scan inputs in VMEM scratch, time on the leading (sublane) axis ----
    xc_scr[...] = xc
    dlt_scr[...] = delta
    b_scr[...] = dbc[:, ED:ED + N]
    c_scr[...] = dbc[:, ED + N:]

    # ---- selective scan; state h is (N, ED): lane axis = ED (dense) ----
    A = -jnp.exp(At_ref[...])                                         # (N, ED)
    Dv = Dp_ref[...]                                                  # (1, ED)

    def step(t, h):
        d_t = dlt_scr[pl.ds(t, 1), :]                                 # (1, ED)
        x_t = xc_scr[pl.ds(t, 1), :]                                  # (1, ED)
        b_t = b_scr[pl.ds(t, 1), :]                                   # (1, N)
        c_t = c_scr[pl.ds(t, 1), :]                                   # (1, N)
        dA = jnp.exp(d_t * A)                                         # (N, ED)
        dBx = (b_t[:, :, None] * (d_t * x_t)[:, None, :])[0]          # (N, ED)
        h = dA * h + dBx
        y_t = jnp.dot(c_t, h, preferred_element_type=jnp.float32) + Dv * x_t
        y_scr[pl.ds(t, 1), :] = y_t                                   # (1, ED)
        return h

    lax.fori_loop(0, L, step, jnp.zeros((N, ED), jnp.float32), unroll=unroll)

    # ---- SiLU(z) gate, out_proj, residual ----
    y = y_scr[...] * (z * pl.reciprocal(1.0 + jnp.exp(-z), approx=True))
    out = jnp.dot(y, outw_ref[...], preferred_element_type=jnp.float32)  # (L, D)
    o_ref[...] = (h_res + out).reshape(1, L, D)


def mamba_layer(h, lp, *, d_state, d_conv):
    B, L, D = h.shape
    ED = lp["D_param"].shape[1]
    N = d_state
    K = d_conv

    def full(shape):
        return pl.BlockSpec(shape, lambda b: (0,) * len(shape))

    kernel = functools.partial(_mamba_layer_kernel, L=L, D=D, ED=ED, N=N, K=K,
                               eps=1e-5, unroll=min(L, 8))
    return pl.pallas_call(
        kernel,
        out_shape=jax.ShapeDtypeStruct((B, L, D), jnp.float32),
        grid_spec=pltpu.PrefetchScalarGridSpec(
            num_scalar_prefetch=0,
            grid=(B,),
            in_specs=[
                pl.BlockSpec((1, L, D), lambda b: (b, 0, 0)),     # residual stream
                full(lp["norm_w"].shape),
                full(lp["in_proj_wT"].shape),
                full(lp["conv_w"].shape),
                full(lp["conv_b"].shape),
                full(lp["xproj_comb_wT"].shape),
                full(lp["xproj_comb_b"].shape),
                full(lp["A_t"].shape),
                full(lp["D_param"].shape),
                full(lp["out_proj_wT"].shape),
            ],
            out_specs=pl.BlockSpec((1, L, D), lambda b: (b, 0, 0)),
            scratch_shapes=[
                pltpu.VMEM((L + K - 1, ED), jnp.float32),          # causal pad buffer
                pltpu.VMEM((L, ED), jnp.float32),                  # xc (conv+SiLU)
                pltpu.VMEM((L, ED), jnp.float32),                  # delta
                pltpu.VMEM((L, N), jnp.float32),                   # B
                pltpu.VMEM((L, N), jnp.float32),                   # C
                pltpu.VMEM((L, ED), jnp.float32),                  # y
            ],
        ),
        compiler_params=pltpu.CompilerParams(
            dimension_semantics=("parallel",),
            vmem_limit_bytes=32 * 1024 * 1024,
        ),
    )(h, lp["norm_w"], lp["in_proj_wT"], lp["conv_w"], lp["conv_b"],
      lp["xproj_comb_wT"], lp["xproj_comb_b"], lp["A_t"], lp["D_param"],
      lp["out_proj_wT"])


# --------------------------------- model forward -------------------------------------
def net_forward(prep, x, *, hidden, d_state, d_conv):
    B, L, in_dim = x.shape
    h = linear(x.reshape(B * L, in_dim), prep["fc1_wT"], prep["fc1_b"])
    h = h.reshape(B, L, hidden)
    for lp in prep["layers"]:
        h = mamba_layer(h, lp, d_state=d_state, d_conv=d_conv)
    out = linear(h.reshape(B * L, hidden), prep["fc2_wT"], prep["fc2_b"],
                 activation="tanh")
    return out.reshape(-1)                                            # torch .flatten()


# ------------------------- one-time weight preparation --------------------------------
def prepare_params(params, *, d_state):
    N = d_state
    prep = {
        "fc1_wT": jnp.transpose(params["fc1_w"]),
        "fc1_b": params["fc1_b"].reshape(1, -1),
        "fc2_wT": jnp.transpose(params["fc2_w"]),
        "fc2_b": params["fc2_b"].reshape(1, -1),
        "layers": [],
    }
    for lp in params["layers"]:
        dt_rank = lp["dt_proj_w"].shape[1]
        xproj_T = jnp.transpose(lp["x_proj_w"])                       # (ED, dt_rank+2N)
        # Fold dt_proj into x_proj: delta_pre = xc @ W_delta + dt_proj_b
        W_delta = xproj_T[:, :dt_rank] @ jnp.transpose(lp["dt_proj_w"])   # (ED, ED)
        W_comb = jnp.concatenate(
            [W_delta, xproj_T[:, dt_rank:dt_rank + N], xproj_T[:, dt_rank + N:]], axis=1)
        b_comb = jnp.concatenate(
            [lp["dt_proj_b"], jnp.zeros((2 * N,), jnp.float32)]).reshape(1, -1)
        prep["layers"].append({
            "norm_w": lp["norm_w"].reshape(1, -1),
            "in_proj_wT": jnp.transpose(lp["in_proj_w"]),             # (D, 2*ED)
            "conv_w": lp["conv_w"],                                   # (K, ED)
            "conv_b": lp["conv_b"].reshape(1, -1),
            "xproj_comb_wT": W_comb,                                  # (ED, ED+2N)
            "xproj_comb_b": b_comb,                                   # (1, ED+2N)
            "A_t": jnp.transpose(lp["A_log"]),                        # (N, ED) lane-dense
            "D_param": lp["D_param"].reshape(1, -1),                  # (1, ED)
            "out_proj_wT": jnp.transpose(lp["out_proj_w"]),           # (ED, D)
        })
    return prep


# ----------------------------------- param init ---------------------------------------
def init_params(key, in_dim, out_dim, hidden, n_layers, d_state, d_conv, expand):
    ED = expand * hidden
    dt_rank = (hidden + 15) // 16
    keys = iter(jax.random.split(key, 8 + 16 * n_layers))

    def u(shape, fan_in):
        s = 1.0 / float(fan_in) ** 0.5
        return jax.random.uniform(next(keys), shape, jnp.float32, -s, s)

    params = {
        "fc1_w": u((hidden, in_dim), in_dim),
        "fc1_b": u((hidden,), in_dim),
        "fc2_w": u((out_dim, hidden), hidden),
        "fc2_b": u((out_dim,), hidden),
        "layers": [],
    }
    for _ in range(n_layers):
        params["layers"].append({
            "norm_w": jnp.ones((hidden,), jnp.float32),
            "in_proj_w": u((2 * ED, hidden), hidden),     # PyTorch (out, in) layout
            "conv_w": u((d_conv, ED), d_conv),            # depthwise weight (K, ED)
            "conv_b": u((ED,), d_conv),
            "x_proj_w": u((dt_rank + 2 * d_state, ED), ED),
            "dt_proj_w": u((ED, dt_rank), dt_rank),
            # TODO(synk): mambapy uses inverse-softplus(dt) init for dt_proj_b; plain
            # uniform init kept here (forward math is identical for given params).
            "dt_proj_b": u((ED,), dt_rank),
            "A_log": jnp.log(jnp.broadcast_to(
                jnp.arange(1, d_state + 1, dtype=jnp.float32), (ED, d_state))),
            "D_param": jnp.ones((ED,), jnp.float32),
            "out_proj_w": u((hidden, ED), ED),
        })
    return params


if __name__ == "__main__":
    in_dim, out_dim, hidden, n_layers = 8, 4, 32, 2
    d_state, d_conv, expand = 16, 4, 2
    B, L = 2, 8

    root = jax.random.PRNGKey(0)
    params = init_params(root, in_dim, out_dim, hidden, n_layers,
                         d_state, d_conv, expand)
    prep = prepare_params(params, d_state=d_state)                    # one-time re-layout
    x = jax.random.normal(jax.random.PRNGKey(0), (B, L, in_dim), jnp.float32)

    fwd = jax.jit(functools.partial(net_forward, hidden=hidden,
                                    d_state=d_state, d_conv=d_conv))
    out = fwd(prep, x)
    jax.block_until_ready(out)
    assert out.shape == (B * L * out_dim,), out.shape
    assert bool(jnp.all(jnp.isfinite(out)))
    print("KERNEL_OK")
</pallas_src>

<mosaic_0001>
module attributes {stable_mosaic.version = 11 : i64} {
  func.func @_linear_kernel(%arg0: i32, %arg1: memref<16x8xf32, #tpu.memory_space<vmem>>, %arg2: memref<8x32xf32, #tpu.memory_space<vmem>>, %arg3: memref<1x32xf32, #tpu.memory_space<vmem>>, %arg4: memref<16x32xf32, #tpu.memory_space<vmem>>) attributes {dimension_semantics = [#tpu.dimension_semantics<parallel>], iteration_bounds = array<i64: 1>, scalar_prefetch = 0 : i64, scratch_operands = 0 : i64, tpu.core_type = #tpu.core_type<tc>, window_params = [{transform_indices = @transform_0, window_bounds = array<i64: 16, 8>}, {pipeline_mode = #tpu.pipeline_mode<synchronous>, transform_indices = @transform_1, window_bounds = array<i64: 8, 32>}, {pipeline_mode = #tpu.pipeline_mode<synchronous>, transform_indices = @transform_2, window_bounds = array<i64: 1, 32>}, {transform_indices = @transform_3, window_bounds = array<i64: 16, 32>}]} {
    %c0 = arith.constant 0 : index
    %c0_0 = arith.constant 0 : index
    %0 = vector.load %arg1[%c0, %c0_0] : memref<16x8xf32, #tpu.memory_space<vmem>>, vector<16x8xf32>
    %c0_1 = arith.constant 0 : index
    %c0_2 = arith.constant 0 : index
    %1 = vector.load %arg2[%c0_1, %c0_2] : memref<8x32xf32, #tpu.memory_space<vmem>>, vector<8x32xf32>
    %cst = arith.constant dense<0.000000e+00> : vector<16x32xf32>
    %2 = tpu.matmul %0, %1, %cst {dimension_numbers = #tpu.dot_dimension_numbers<[1], [0], [0], [1], [0, 0, 1, 1], [], []>} : vector<16x8xf32>, vector<8x32xf32>, vector<16x32xf32> -> vector<16x32xf32>
    %c0_3 = arith.constant 0 : index
    %c0_4 = arith.constant 0 : index
    %3 = vector.load %arg3[%c0_3, %c0_4] : memref<1x32xf32, #tpu.memory_space<vmem>>, vector<1x32xf32>
    %4 = vector.broadcast %3 : vector<1x32xf32> to vector<16x32xf32>
    %5 = arith.addf %2, %4 : vector<16x32xf32>
    %c0_5 = arith.constant 0 : index
    %c0_6 = arith.constant 0 : index
    %6 = vector.load %arg4[%c0_5, %c0_6] : memref<16x32xf32, #tpu.memory_space<vmem>>, vector<16x32xf32>
    tpu.vector_store %arg4[%c0_5, %c0_6], %5 {strides = array<i32>} : memref<16x32xf32, #tpu.memory_space<vmem>>, vector<16x32xf32>,
    return
  }
  func.func @transform_0(%arg0: i32) -> (i32, i32) {
    %c0_i32 = arith.constant 0 : i32
    %c0_i32_0 = arith.constant 0 : i32
    return %arg0, %c0_i32 : i32, i32
  }
  func.func @transform_1(%arg0: i32) -> (i32, i32) {
    %c0_i32 = arith.constant 0 : i32
    %c0_i32_0 = arith.constant 0 : i32
    %c0_i32_1 = arith.constant 0 : i32
    return %c0_i32, %c0_i32_0 : i32, i32
  }
  func.func @transform_2(%arg0: i32) -> (i32, i32) {
    %c0_i32 = arith.constant 0 : i32
    %c0_i32_0 = arith.constant 0 : i32
    %c0_i32_1 = arith.constant 0 : i32
    return %c0_i32, %c0_i32_0 : i32, i32
  }
  func.func @transform_3(%arg0: i32) -> (i32, i32) {
    %c0_i32 = arith.constant 0 : i32
    %c0_i32_0 = arith.constant 0 : i32
    return %arg0, %c0_i32 : i32, i32
  }
}

module attributes {stable_mosaic.version = 11 : i64} {
  func.func @_mamba_layer_kernel(%arg0: i32, %arg1: memref<1x8x32xf32, #tpu.memory_space<vmem>>, %arg2: memref<1x32xf32, #tpu.memory_space<vmem>>, %arg3: memref<32x128xf32, #tpu.memory_space<vmem>>, %arg4: memref<4x64xf32, #tpu.memory_space<vmem>>, %arg5: memref<1x64xf32, #tpu.memory_space<vmem>>, %arg6: memref<64x96xf32, #tpu.memory_space<vmem>>, %arg7: memref<1x96xf32, #tpu.memory_space<vmem>>, %arg8: memref<16x64xf32, #tpu.memory_space<vmem>>, %arg9: memref<1x64xf32, #tpu.memory_space<vmem>>, %arg10: memref<64x32xf32, #tpu.memory_space<vmem>>, %arg11: memref<1x8x32xf32, #tpu.memory_space<vmem>>, %arg12: memref<11x64xf32, #tpu.memory_space<vmem>>, %arg13: memref<8x64xf32, #tpu.memory_space<vmem>>, %arg14: memref<8x64xf32, #tpu.memory_space<vmem>>, %arg15: memref<8x16xf32, #tpu.memory_space<vmem>>, %arg16: memref<8x16xf32, #tpu.memory_space<vmem>>, %arg17: memref<8x64xf32, #tpu.memory_space<vmem>>) attributes {dimension_semantics = [#tpu.dimension_semantics<parallel>], iteration_bounds = array<i64: 2>, scalar_prefetch = 0 : i64, scratch_operands = 6 : i64, tpu.core_type = #tpu.core_type<tc>, window_params = [{transform_indices = @transform_0, window_bounds = array<i64: 1, 8, 32>}, {pipeline_mode = #tpu.pipeline_mode<synchronous>, transform_indices = @transform_1, window_bounds = array<i64: 1, 32>}, {pipeline_mode = #tpu.pipeline_mode<synchronous>, transform_indices = @transform_2, window_bounds = array<i64: 32, 128>}, {pipeline_mode = #tpu.pipeline_mode<synchronous>, transform_indices = @transform_3, window_bounds = array<i64: 4, 64>}, {pipeline_mode = #tpu.pipeline_mode<synchronous>, transform_indices = @transform_4, window_bounds = array<i64: 1, 64>}, {pipeline_mode = #tpu.pipeline_mode<synchronous>, transform_indices = @transform_5, window_bounds = array<i64: 64, 96>}, {pipeline_mode = #tpu.pipeline_mode<synchronous>, transform_indices = @transform_6, window_bounds = array<i64: 1, 96>}, {pipeline_mode = #tpu.pipeline_mode<synchronous>, transform_indices = @transform_7, window_bounds = array<i64: 16, 64>}, {pipeline_mode = #tpu.pipeline_mode<synchronous>, transform_indices = @transform_8, window_bounds = array<i64: 1, 64>}, {pipeline_mode = #tpu.pipeline_mode<synchronous>, transform_indices = @transform_9, window_bounds = array<i64: 64, 32>}, {transform_indices = @transform_10, window_bounds = array<i64: 1, 8, 32>}]} {
    %c0 = arith.constant 0 : index
    %c0_0 = arith.constant 0 : index
    %c0_1 = arith.constant 0 : index
    %0 = vector.load %arg1[%c0, %c0_0, %c0_1] : memref<1x8x32xf32, #tpu.memory_space<vmem>>, vector<1x8x32xf32>
    %1 = vector.shape_cast %0 : vector<1x8x32xf32> to vector<8x32xf32>
    %2 = arith.mulf %1, %1 : vector<8x32xf32>
    %cst = arith.constant dense<0.000000e+00> : vector<8xf32>
    %3 = vector.multi_reduction <add>, %2, %cst [1] : vector<8x32xf32> to vector<8xf32>
    %4 = vector.shape_cast %3 : vector<8xf32> to vector<8x1xf32>
    %cst_2 = arith.constant 3.200000e+01 : f32
    %5 = vector.broadcast %cst_2 : f32 to vector<8x1xf32>
    %6 = arith.divf %4, %5 : vector<8x1xf32>
    %cst_3 = arith.constant 9.99999974E-6 : f32
    %7 = vector.broadcast %cst_3 : f32 to vector<8x1xf32>
    %8 = arith.addf %6, %7 : vector<8x1xf32>
    %9 = math.rsqrt %8 : vector<8x1xf32>
    %10 = vector.broadcast %9 : vector<8x1xf32> to vector<8x32xf32>
    %11 = arith.mulf %1, %10 : vector<8x32xf32>
    %c0_4 = arith.constant 0 : index
    %c0_5 = arith.constant 0 : index
    %12 = vector.load %arg2[%c0_4, %c0_5] : memref<1x32xf32, #tpu.memory_space<vmem>>, vector<1x32xf32>
    %13 = vector.broadcast %12 : vector<1x32xf32> to vector<8x32xf32>
    %14 = arith.mulf %11, %13 : vector<8x32xf32>
    %c0_6 = arith.constant 0 : index
    %c0_7 = arith.constant 0 : index
    %15 = vector.load %arg3[%c0_6, %c0_7] : memref<32x128xf32, #tpu.memory_space<vmem>>, vector<32x128xf32>
    %cst_8 = arith.constant dense<0.000000e+00> : vector<8x128xf32>
    %16 = tpu.matmul %14, %15, %cst_8 {dimension_numbers = #tpu.dot_dimension_numbers<[1], [0], [0], [1], [0, 0, 1, 1], [], []>} : vector<8x32xf32>, vector<32x128xf32>, vector<8x128xf32> -> vector<8x128xf32>
    %17 = vector.extract_strided_slice %16 {offsets = [0, 64], sizes = [8, 64], strides = [1, 1]} : vector<8x128xf32> to vector<8x64xf32>
    %cst_9 = arith.constant 0.000000e+00 : f32
    %18 = vector.broadcast %cst_9 : f32 to vector<3x64xf32>
    %c0_10 = arith.constant 0 : index
    %c0_11 = arith.constant 0 : index
    %19 = vector.load %arg12[%c0_10, %c0_11] : memref<11x64xf32, #tpu.memory_space<vmem>>, vector<3x64xf32>
    tpu.vector_store %arg12[%c0_10, %c0_11], %18 {strides = array<i32>} : memref<11x64xf32, #tpu.memory_space<vmem>>, vector<3x64xf32>,
    %20 = vector.extract_strided_slice %16 {offsets = [0, 0], sizes = [8, 64], strides = [1, 1]} : vector<8x128xf32> to vector<8x64xf32>
    %c3 = arith.constant 3 : index
    %c0_12 = arith.constant 0 : index
    %21 = vector.load %arg12[%c3, %c0_12] : memref<11x64xf32, #tpu.memory_space<vmem>>, vector<8x64xf32>
    tpu.vector_store %arg12[%c3, %c0_12], %20 {strides = array<i32>} : memref<11x64xf32, #tpu.memory_space<vmem>>, vector<8x64xf32>,
    %c0_13 = arith.constant 0 : index
    %c0_14 = arith.constant 0 : index
    %22 = vector.load %arg12[%c0_13, %c0_14] : memref<11x64xf32, #tpu.memory_space<vmem>>, vector<11x64xf32>
    %c0_15 = arith.constant 0 : index
    %c0_16 = arith.constant 0 : index
    %23 = vector.load %arg5[%c0_15, %c0_16] : memref<1x64xf32, #tpu.memory_space<vmem>>, vector<1x64xf32>
    %24 = vector.extract_strided_slice %22 {offsets = [0, 0], sizes = [8, 64], strides = [1, 1]} : vector<11x64xf32> to vector<8x64xf32>
    %c0_17 = arith.constant 0 : index
    %c0_18 = arith.constant 0 : index
    %25 = vector.load %arg4[%c0_17, %c0_18] : memref<4x64xf32, #tpu.memory_space<vmem>>, vector<1x64xf32>
    %26 = vector.broadcast %25 : vector<1x64xf32> to vector<8x64xf32>
    %27 = arith.mulf %24, %26 : vector<8x64xf32>
    %28 = vector.broadcast %23 : vector<1x64xf32> to vector<8x64xf32>
    %29 = arith.addf %28, %27 : vector<8x64xf32>
    %30 = vector.extract_strided_slice %22 {offsets = [1, 0], sizes = [8, 64], strides = [1, 1]} : vector<11x64xf32> to vector<8x64xf32>
    %c1 = arith.constant 1 : index
    %c0_19 = arith.constant 0 : index
    %31 = vector.load %arg4[%c1, %c0_19] : memref<4x64xf32, #tpu.memory_space<vmem>>, vector<1x64xf32>
    %32 = vector.broadcast %31 : vector<1x64xf32> to vector<8x64xf32>
    %33 = arith.mulf %30, %32 : vector<8x64xf32>
    %34 = arith.addf %29, %33 : vector<8x64xf32>
    %35 = vector.extract_strided_slice %22 {offsets = [2, 0], sizes = [8, 64], strides = [1, 1]} : vector<11x64xf32> to vector<8x64xf32>
    %c2 = arith.constant 2 : index
    %c0_20 = arith.constant 0 : index
    %36 = vector.load %arg4[%c2, %c0_20] : memref<4x64xf32, #tpu.memory_space<vmem>>, vector<1x64xf32>
    %37 = vector.broadcast %36 : vector<1x64xf32> to vector<8x64xf32>
    %38 = arith.mulf %35, %37 : vector<8x64xf32>
    %39 = arith.addf %34, %38 : vector<8x64xf32>
    %40 = vector.extract_strided_slice %22 {offsets = [3, 0], sizes = [8, 64], strides = [1, 1]} : vector<11x64xf32> to vector<8x64xf32>
    %c3_21 = arith.constant 3 : index
    %c0_22 = arith.constant 0 : index
    %41 = vector.load %arg4[%c3_21, %c0_22] : memref<4x64xf32, #tpu.memory_space<vmem>>, vector<1x64xf32>
    %42 = vector.broadcast %41 : vector<1x64xf32> to vector<8x64xf32>
    %43 = arith.mulf %40, %42 : vector<8x64xf32>
    %44 = arith.addf %39, %43 : vector<8x64xf32>
    %cst_23 = arith.constant 0.000000e+00 : f32
    %45 = vector.broadcast %cst_23 : f32 to vector<8x64xf32>
    %46 = arith.subf %45, %44 : vector<8x64xf32>
    %47 = math.exp %46 : vector<8x64xf32>
    %cst_24 = arith.constant 1.000000e+00 : f32
    %48 = vector.broadcast %cst_24 : f32 to vector<8x64xf32>
    %49 = arith.addf %48, %47 : vector<8x64xf32>
    %50 = tpu.reciprocal %49 {approx = true} : vector<8x64xf32> -> vector<8x64xf32>
    %51 = arith.mulf %44, %50 : vector<8x64xf32>
    %c0_25 = arith.constant 0 : index
    %c0_26 = arith.constant 0 : index
    %52 = vector.load %arg6[%c0_25, %c0_26] : memref<64x96xf32, #tpu.memory_space<vmem>>, vector<64x96xf32>
    %cst_27 = arith.constant dense<0.000000e+00> : vector<8x96xf32>
    %53 = tpu.matmul %51, %52, %cst_27 {dimension_numbers = #tpu.dot_dimension_numbers<[1], [0], [0], [1], [0, 0, 1, 1], [], []>} : vector<8x64xf32>, vector<64x96xf32>, vector<8x96xf32> -> vector<8x96xf32>
    %c0_28 = arith.constant 0 : index
    %c0_29 = arith.constant 0 : index
    %54 = vector.load %arg7[%c0_28, %c0_29] : memref<1x96xf32, #tpu.memory_space<vmem>>, vector<1x96xf32>
    %55 = vector.broadcast %54 : vector<1x96xf32> to vector<8x96xf32>
    %56 = arith.addf %53, %55 : vector<8x96xf32>
    %57 = vector.extract_strided_slice %56 {offsets = [0, 0], sizes = [8, 64], strides = [1, 1]} : vector<8x96xf32> to vector<8x64xf32>
    %cst_30 = arith.constant 0.000000e+00 : f32
    %58 = vector.broadcast %cst_30 : f32 to vector<8x64xf32>
    %59 = arith.maximumf %57, %58 : vector<8x64xf32>
    %60 = math.absf %57 : vector<8x64xf32>
    %cst_31 = arith.constant 0.000000e+00 : f32
    %61 = vector.broadcast %cst_31 : f32 to vector<8x64xf32>
    %62 = arith.subf %61, %60 : vector<8x64xf32>
    %63 = math.exp %62 : vector<8x64xf32>
    %cst_32 = arith.constant 1.000000e+00 : f32
    %64 = vector.broadcast %cst_32 : f32 to vector<8x64xf32>
    %65 = arith.addf %64, %63 : vector<8x64xf32>
    %66 = math.log %65 : vector<8x64xf32>
    %67 = arith.addf %59, %66 : vector<8x64xf32>
    %c0_33 = arith.constant 0 : index
    %c0_34 = arith.constant 0 : index
    %68 = vector.load %arg13[%c0_33, %c0_34] : memref<8x64xf32, #tpu.memory_space<vmem>>, vector<8x64xf32>
    tpu.vector_store %arg13[%c0_33, %c0_34], %51 {strides = array<i32>} : memref<8x64xf32, #tpu.memory_space<vmem>>, vector<8x64xf32>,
    %c0_35 = arith.constant 0 : index
    %c0_36 = arith.constant 0 : index
    %69 = vector.load %arg14[%c0_35, %c0_36] : memref<8x64xf32, #tpu.memory_space<vmem>>, vector<8x64xf32>
    tpu.vector_store %arg14[%c0_35, %c0_36], %67 {strides = array<i32>} : memref<8x64xf32, #tpu.memory_space<vmem>>, vector<8x64xf32>,
    %70 = vector.extract_strided_slice %56 {offsets = [0, 64], sizes = [8, 16], strides = [1, 1]} : vector<8x96xf32> to vector<8x16xf32>
    %c0_37 = arith.constant 0 : index
    %c0_38 = arith.constant 0 : index
    %71 = vector.load %arg15[%c0_37, %c0_38] : memref<8x16xf32, #tpu.memory_space<vmem>>, vector<8x16xf32>
    tpu.vector_store %arg15[%c0_37, %c0_38], %70 {strides = array<i32>} : memref<8x16xf32, #tpu.memory_space<vmem>>, vector<8x16xf32>,
    %72 = vector.extract_strided_slice %56 {offsets = [0, 80], sizes = [8, 16], strides = [1, 1]} : vector<8x96xf32> to vector<8x16xf32>
    %c0_39 = arith.constant 0 : index
    %c0_40 = arith.constant 0 : index
    %73 = vector.load %arg16[%c0_39, %c0_40] : memref<8x16xf32, #tpu.memory_space<vmem>>, vector<8x16xf32>
    tpu.vector_store %arg16[%c0_39, %c0_40], %72 {strides = array<i32>} : memref<8x16xf32, #tpu.memory_space<vmem>>, vector<8x16xf32>,
    %c0_41 = arith.constant 0 : index
    %c0_42 = arith.constant 0 : index
    %74 = vector.load %arg8[%c0_41, %c0_42] : memref<16x64xf32, #tpu.memory_space<vmem>>, vector<16x64xf32>
    %75 = math.exp %74 : vector<16x64xf32>
    %cst_43 = arith.constant 0.000000e+00 : f32
    %76 = vector.broadcast %cst_43 : f32 to vector<16x64xf32>
    %77 = arith.subf %76, %75 : vector<16x64xf32>
    %c0_44 = arith.constant 0 : index
    %c0_45 = arith.constant 0 : index
    %78 = vector.load %arg9[%c0_44, %c0_45] : memref<1x64xf32, #tpu.memory_space<vmem>>, vector<1x64xf32>
    %cst_46 = arith.constant 0.000000e+00 : f32
    %79 = vector.broadcast %cst_46 : f32 to vector<16x64xf32>
    %c0_i32 = arith.constant 0 : i32
    %80 = arith.index_cast %c0_i32 : i32 to index
    %c0_47 = arith.constant 0 : index
    %81 = vector.load %arg14[%80, %c0_47] : memref<8x64xf32, #tpu.memory_space<vmem>>, vector<1x64xf32>
    %82 = arith.index_cast %c0_i32 : i32 to index
    %c0_48 = arith.constant 0 : index
    %83 = vector.load %arg13[%82, %c0_48] : memref<8x64xf32, #tpu.memory_space<vmem>>, vector<1x64xf32>
    %84 = arith.index_cast %c0_i32 : i32 to index
    %c0_49 = arith.constant 0 : index
    %85 = vector.load %arg15[%84, %c0_49] : memref<8x16xf32, #tpu.memory_space<vmem>>, vector<1x16xf32>
    %86 = arith.index_cast %c0_i32 : i32 to index
    %c0_50 = arith.constant 0 : index
    %87 = vector.load %arg16[%86, %c0_50] : memref<8x16xf32, #tpu.memory_space<vmem>>, vector<1x16xf32>
    %88 = vector.broadcast %81 : vector<1x64xf32> to vector<16x64xf32>
    %89 = arith.mulf %88, %77 : vector<16x64xf32>
    %90 = math.exp %89 : vector<16x64xf32>
    %91 = vector.shape_cast %85 : vector<1x16xf32> to vector<1x16x1xf32>
    %92 = arith.mulf %81, %83 : vector<1x64xf32>
    %93 = vector.shape_cast %92 : vector<1x64xf32> to vector<1x1x64xf32>
    %94 = vector.broadcast %91 : vector<1x16x1xf32> to vector<1x16x64xf32>
    %95 = vector.broadcast %93 : vector<1x1x64xf32> to vector<1x16x64xf32>
    %96 = arith.mulf %94, %95 : vector<1x16x64xf32>
    %97 = vector.shape_cast %96 : vector<1x16x64xf32> to vector<16x64xf32>
    %98 = arith.mulf %90, %79 : vector<16x64xf32>
    %99 = arith.addf %98, %97 : vector<16x64xf32>
    %cst_51 = arith.constant dense<0.000000e+00> : vector<1x64xf32>
    %100 = tpu.matmul %87, %99, %cst_51 {dimension_numbers = #tpu.dot_dimension_numbers<[1], [0], [0], [1], [0, 0, 1, 1], [], []>} : vector<1x16xf32>, vector<16x64xf32>, vector<1x64xf32> -> vector<1x64xf32>
    %101 = arith.mulf %78, %83 : vector<1x64xf32>
    %102 = arith.addf %100, %101 : vector<1x64xf32>
    %103 = arith.index_cast %c0_i32 : i32 to index
    %c0_52 = arith.constant 0 : index
    %104 = vector.load %arg17[%103, %c0_52] : memref<8x64xf32, #tpu.memory_space<vmem>>, vector<1x64xf32>
    tpu.vector_store %arg17[%103, %c0_52], %102 {strides = array<i32>} : memref<8x64xf32, #tpu.memory_space<vmem>>, vector<1x64xf32>,
    %c1_i32 = arith.constant 1 : i32
    %105 = arith.index_cast %c1_i32 : i32 to index
    %c0_53 = arith.constant 0 : index
    %106 = vector.load %arg14[%105, %c0_53] : memref<8x64xf32, #tpu.memory_space<vmem>>, vector<1x64xf32>
    %107 = arith.index_cast %c1_i32 : i32 to index
    %c0_54 = arith.constant 0 : index
    %108 = vector.load %arg13[%107, %c0_54] : memref<8x64xf32, #tpu.memory_space<vmem>>, vector<1x64xf32>
    %109 = arith.index_cast %c1_i32 : i32 to index
    %c0_55 = arith.constant 0 : index
    %110 = vector.load %arg15[%109, %c0_55] : memref<8x16xf32, #tpu.memory_space<vmem>>, vector<1x16xf32>
    %111 = arith.index_cast %c1_i32 : i32 to index
    %c0_56 = arith.constant 0 : index
    %112 = vector.load %arg16[%111, %c0_56] : memref<8x16xf32, #tpu.memory_space<vmem>>, vector<1x16xf32>
    %113 = vector.broadcast %106 : vector<1x64xf32> to vector<16x64xf32>
    %114 = arith.mulf %113, %77 : vector<16x64xf32>
    %115 = math.exp %114 : vector<16x64xf32>
    %116 = vector.shape_cast %110 : vector<1x16xf32> to vector<1x16x1xf32>
    %117 = arith.mulf %106, %108 : vector<1x64xf32>
    %118 = vector.shape_cast %117 : vector<1x64xf32> to vector<1x1x64xf32>
    %119 = vector.broadcast %116 : vector<1x16x1xf32> to vector<1x16x64xf32>
    %120 = vector.broadcast %118 : vector<1x1x64xf32> to vector<1x16x64xf32>
    %121 = arith.mulf %119, %120 : vector<1x16x64xf32>
    %122 = vector.shape_cast %121 : vector<1x16x64xf32> to vector<16x64xf32>
    %123 = arith.mulf %115, %99 : vector<16x64xf32>
    %124 = arith.addf %123, %122 : vector<16x64xf32>
    %cst_57 = arith.constant dense<0.000000e+00> : vector<1x64xf32>
    %125 = tpu.matmul %112, %124, %cst_57 {dimension_numbers = #tpu.dot_dimension_numbers<[1], [0], [0], [1], [0, 0, 1, 1], [], []>} : vector<1x16xf32>, vector<16x64xf32>, vector<1x64xf32> -> vector<1x64xf32>
    %126 = arith.mulf %78, %108 : vector<1x64xf32>
    %127 = arith.addf %125, %126 : vector<1x64xf32>
    %128 = arith.index_cast %c1_i32 : i32 to index
    %c0_58 = arith.constant 0 : index
    %129 = vector.load %arg17[%128, %c0_58] : memref<8x64xf32, #tpu.memory_space<vmem>>, vector<1x64xf32>
    tpu.vector_store %arg17[%128, %c0_58], %127 {strides = array<i32>} : memref<8x64xf32, #tpu.memory_space<vmem>>, vector<1x64xf32>,
    %c2_i32 = arith.constant 2 : i32
    %130 = arith.index_cast %c2_i32 : i32 to index
    %c0_59 = arith.constant 0 : index
    %131 = vector.load %arg14[%130, %c0_59] : memref<8x64xf32, #tpu.memory_space<vmem>>, vector<1x64xf32>
    %132 = arith.index_cast %c2_i32 : i32 to index
    %c0_60 = arith.constant 0 : index
    %133 = vector.load %arg13[%132, %c0_60] : memref<8x64xf32, #tpu.memory_space<vmem>>, vector<1x64xf32>
    %134 = arith.index_cast %c2_i32 : i32 to index
    %c0_61 = arith.constant 0 : index
    %135 = vector.load %arg15[%134, %c0_61] : memref<8x16xf32, #tpu.memory_space<vmem>>, vector<1x16xf32>
    %136 = arith.index_cast %c2_i32 : i32 to index
    %c0_62 = arith.constant 0 : index
    %137 = vector.load %arg16[%136, %c0_62] : memref<8x16xf32, #tpu.memory_space<vmem>>, vector<1x16xf32>
    %138 = vector.broadcast %131 : vector<1x64xf32> to vector<16x64xf32>
    %139 = arith.mulf %138, %77 : vector<16x64xf32>
    %140 = math.exp %139 : vector<16x64xf32>
    %141 = vector.shape_cast %135 : vector<1x16xf32> to vector<1x16x1xf32>
    %142 = arith.mulf %131, %133 : vector<1x64xf32>
    %143 = vector.shape_cast %142 : vector<1x64xf32> to vector<1x1x64xf32>
    %144 = vector.broadcast %141 : vector<1x16x1xf32> to vector<1x16x64xf32>
    %145 = vector.broadcast %143 : vector<1x1x64xf32> to vector<1x16x64xf32>
    %146 = arith.mulf %144, %145 : vector<1x16x64xf32>
    %147 = vector.shape_cast %146 : vector<1x16x64xf32> to vector<16x64xf32>
    %148 = arith.mulf %140, %124 : vector<16x64xf32>
    %149 = arith.addf %148, %147 : vector<16x64xf32>
    %cst_63 = arith.constant dense<0.000000e+00> : vector<1x64xf32>
    %150 = tpu.matmul %137, %149, %cst_63 {dimension_numbers = #tpu.dot_dimension_numbers<[1], [0], [0], [1], [0, 0, 1, 1], [], []>} : vector<1x16xf32>, vector<16x64xf32>, vector<1x64xf32> -> vector<1x64xf32>
    %151 = arith.mulf %78, %133 : vector<1x64xf32>
    %152 = arith.addf %150, %151 : vector<1x64xf32>
    %153 = arith.index_cast %c2_i32 : i32 to index
    %c0_64 = arith.constant 0 : index
    %154 = vector.load %arg17[%153, %c0_64] : memref<8x64xf32, #tpu.memory_space<vmem>>, vector<1x64xf32>
    tpu.vector_store %arg17[%153, %c0_64], %152 {strides = array<i32>} : memref<8x64xf32, #tpu.memory_space<vmem>>, vector<1x64xf32>,
    %c3_i32 = arith.constant 3 : i32
    %155 = arith.index_cast %c3_i32 : i32 to index
    %c0_65 = arith.constant 0 : index
    %156 = vector.load %arg14[%155, %c0_65] : memref<8x64xf32, #tpu.memory_space<vmem>>, vector<1x64xf32>
    %157 = arith.index_cast %c3_i32 : i32 to index
    %c0_66 = arith.constant 0 : index
    %158 = vector.load %arg13[%157, %c0_66] : memref<8x64xf32, #tpu.memory_space<vmem>>, vector<1x64xf32>
    %159 = arith.index_cast %c3_i32 : i32 to index
    %c0_67 = arith.constant 0 : index
    %160 = vector.load %arg15[%159, %c0_67] : memref<8x16xf32, #tpu.memory_space<vmem>>, vector<1x16xf32>
    %161 = arith.index_cast %c3_i32 : i32 to index
    %c0_68 = arith.constant 0 : index
    %162 = vector.load %arg16[%161, %c0_68] : memref<8x16xf32, #tpu.memory_space<vmem>>, vector<1x16xf32>
    %163 = vector.broadcast %156 : vector<1x64xf32> to vector<16x64xf32>
    %164 = arith.mulf %163, %77 : vector<16x64xf32>
    %165 = math.exp %164 : vector<16x64xf32>
    %166 = vector.shape_cast %160 : vector<1x16xf32> to vector<1x16x1xf32>
    %167 = arith.mulf %156, %158 : vector<1x64xf32>
    %168 = vector.shape_cast %167 : vector<1x64xf32> to vector<1x1x64xf32>
    %169 = vector.broadcast %166 : vector<1x16x1xf32> to vector<1x16x64xf32>
    %170 = vector.broadcast %168 : vector<1x1x64xf32> to vector<1x16x64xf32>
    %171 = arith.mulf %169, %170 : vector<1x16x64xf32>
    %172 = vector.shape_cast %171 : vector<1x16x64xf32> to vector<16x64xf32>
    %173 = arith.mulf %165, %149 : vector<16x64xf32>
    %174 = arith.addf %173, %172 : vector<16x64xf32>
    %cst_69 = arith.constant dense<0.000000e+00> : vector<1x64xf32>
    %175 = tpu.matmul %162, %174, %cst_69 {dimension_numbers = #tpu.dot_dimension_numbers<[1], [0], [0], [1], [0, 0, 1, 1], [], []>} : vector<1x16xf32>, vector<16x64xf32>, vector<1x64xf32> -> vector<1x64xf32>
    %176 = arith.mulf %78, %158 : vector<1x64xf32>
    %177 = arith.addf %175, %176 : vector<1x64xf32>
    %178 = arith.index_cast %c3_i32 : i32 to index
    %c0_70 = arith.constant 0 : index
    %179 = vector.load %arg17[%178, %c0_70] : memref<8x64xf32, #tpu.memory_space<vmem>>, vector<1x64xf32>
    tpu.vector_store %arg17[%178, %c0_70], %177 {strides = array<i32>} : memref<8x64xf32, #tpu.memory_space<vmem>>, vector<1x64xf32>,
    %c4_i32 = arith.constant 4 : i32
    %180 = arith.index_cast %c4_i32 : i32 to index
    %c0_71 = arith.constant 0 : index
    %181 = vector.load %arg14[%180, %c0_71] : memref<8x64xf32, #tpu.memory_space<vmem>>, vector<1x64xf32>
    %182 = arith.index_cast %c4_i32 : i32 to index
    %c0_72 = arith.constant 0 : index
    %183 = vector.load %arg13[%182, %c0_72] : memref<8x64xf32, #tpu.memory_space<vmem>>, vector<1x64xf32>
    %184 = arith.index_cast %c4_i32 : i32 to index
    %c0_73 = arith.constant 0 : index
    %185 = vector.load %arg15[%184, %c0_73] : memref<8x16xf32, #tpu.memory_space<vmem>>, vector<1x16xf32>
    %186 = arith.index_cast %c4_i32 : i32 to index
    %c0_74 = arith.constant 0 : index
    %187 = vector.load %arg16[%186, %c0_74] : memref<8x16xf32, #tpu.memory_space<vmem>>, vector<1x16xf32>
    %188 = vector.broadcast %181 : vector<1x64xf32> to vector<16x64xf32>
    %189 = arith.mulf %188, %77 : vector<16x64xf32>
    %190 = math.exp %189 : vector<16x64xf32>
    %191 = vector.shape_cast %185 : vector<1x16xf32> to vector<1x16x1xf32>
    %192 = arith.mulf %181, %183 : vector<1x64xf32>
    %193 = vector.shape_cast %192 : vector<1x64xf32> to vector<1x1x64xf32>
    %194 = vector.broadcast %191 : vector<1x16x1xf32> to vector<1x16x64xf32>
    %195 = vector.broadcast %193 : vector<1x1x64xf32> to vector<1x16x64xf32>
    %196 = arith.mulf %194, %195 : vector<1x16x64xf32>
    %197 = vector.shape_cast %196 : vector<1x16x64xf32> to vector<16x64xf32>
    %198 = arith.mulf %190, %174 : vector<16x64xf32>
    %199 = arith.addf %198, %197 : vector<16x64xf32>
    %cst_75 = arith.constant dense<0.000000e+00> : vector<1x64xf32>
    %200 = tpu.matmul %187, %199, %cst_75 {dimension_numbers = #tpu.dot_dimension_numbers<[1], [0], [0], [1], [0, 0, 1, 1], [], []>} : vector<1x16xf32>, vector<16x64xf32>, vector<1x64xf32> -> vector<1x64xf32>
    %201 = arith.mulf %78, %183 : vector<1x64xf32>
    %202 = arith.addf %200, %201 : vector<1x64xf32>
    %203 = arith.index_cast %c4_i32 : i32 to index
    %c0_76 = arith.constant 0 : index
    %204 = vector.load %arg17[%203, %c0_76] : memref<8x64xf32, #tpu.memory_space<vmem>>, vector<1x64xf32>
    tpu.vector_store %arg17[%203, %c0_76], %202 {strides = array<i32>} : memref<8x64xf32, #tpu.memory_space<vmem>>, vector<1x64xf32>,
    %c5_i32 = arith.constant 5 : i32
    %205 = arith.index_cast %c5_i32 : i32 to index
    %c0_77 = arith.constant 0 : index
    %206 = vector.load %arg14[%205, %c0_77] : memref<8x64xf32, #tpu.memory_space<vmem>>, vector<1x64xf32>
    %207 = arith.index_cast %c5_i32 : i32 to index
    %c0_78 = arith.constant 0 : index
    %208 = vector.load %arg13[%207, %c0_78] : memref<8x64xf32, #tpu.memory_space<vmem>>, vector<1x64xf32>
    %209 = arith.index_cast %c5_i32 : i32 to index
    %c0_79 = arith.constant 0 : index
    %210 = vector.load %arg15[%209, %c0_79] : memref<8x16xf32, #tpu.memory_space<vmem>>, vector<1x16xf32>
    %211 = arith.index_cast %c5_i32 : i32 to index
    %c0_80 = arith.constant 0 : index
    %212 = vector.load %arg16[%211, %c0_80] : memref<8x16xf32, #tpu.memory_space<vmem>>, vector<1x16xf32>
    %213 = vector.broadcast %206 : vector<1x64xf32> to vector<16x64xf32>
    %214 = arith.mulf %213, %77 : vector<16x64xf32>
    %215 = math.exp %214 : vector<16x64xf32>
    %216 = vector.shape_cast %210 : vector<1x16xf32> to vector<1x16x1xf32>
    %217 = arith.mulf %206, %208 : vector<1x64xf32>
    %218 = vector.shape_cast %217 : vector<1x64xf32> to vector<1x1x64xf32>
    %219 = vector.broadcast %216 : vector<1x16x1xf32> to vector<1x16x64xf32>
    %220 = vector.broadcast %218 : vector<1x1x64xf32> to vector<1x16x64xf32>
    %221 = arith.mulf %219, %220 : vector<1x16x64xf32>
    %222 = vector.shape_cast %221 : vector<1x16x64xf32> to vector<16x64xf32>
    %223 = arith.mulf %215, %199 : vector<16x64xf32>
    %224 = arith.addf %223, %222 : vector<16x64xf32>
    %cst_81 = arith.constant dense<0.000000e+00> : vector<1x64xf32>
    %225 = tpu.matmul %212, %224, %cst_81 {dimension_numbers = #tpu.dot_dimension_numbers<[1], [0], [0], [1], [0, 0, 1, 1], [], []>} : vector<1x16xf32>, vector<16x64xf32>, vector<1x64xf32> -> vector<1x64xf32>
    %226 = arith.mulf %78, %208 : vector<1x64xf32>
    %227 = arith.addf %225, %226 : vector<1x64xf32>
    %228 = arith.index_cast %c5_i32 : i32 to index
    %c0_82 = arith.constant 0 : index
    %229 = vector.load %arg17[%228, %c0_82] : memref<8x64xf32, #tpu.memory_space<vmem>>, vector<1x64xf32>
    tpu.vector_store %arg17[%228, %c0_82], %227 {strides = array<i32>} : memref<8x64xf32, #tpu.memory_space<vmem>>, vector<1x64xf32>,
    %c6_i32 = arith.constant 6 : i32
    %230 = arith.index_cast %c6_i32 : i32 to index
    %c0_83 = arith.constant 0 : index
    %231 = vector.load %arg14[%230, %c0_83] : memref<8x64xf32, #tpu.memory_space<vmem>>, vector<1x64xf32>
    %232 = arith.index_cast %c6_i32 : i32 to index
    %c0_84 = arith.constant 0 : index
    %233 = vector.load %arg13[%232, %c0_84] : memref<8x64xf32, #tpu.memory_space<vmem>>, vector<1x64xf32>
    %234 = arith.index_cast %c6_i32 : i32 to index
    %c0_85 = arith.constant 0 : index
    %235 = vector.load %arg15[%234, %c0_85] : memref<8x16xf32, #tpu.memory_space<vmem>>, vector<1x16xf32>
    %236 = arith.index_cast %c6_i32 : i32 to index
    %c0_86 = arith.constant 0 : index
    %237 = vector.load %arg16[%236, %c0_86] : memref<8x16xf32, #tpu.memory_space<vmem>>, vector<1x16xf32>
    %238 = vector.broadcast %231 : vector<1x64xf32> to vector<16x64xf32>
    %239 = arith.mulf %238, %77 : vector<16x64xf32>
    %240 = math.exp %239 : vector<16x64xf32>
    %241 = vector.shape_cast %235 : vector<1x16xf32> to vector<1x16x1xf32>
    %242 = arith.mulf %231, %233 : vector<1x64xf32>
    %243 = vector.shape_cast %242 : vector<1x64xf32> to vector<1x1x64xf32>
    %244 = vector.broadcast %241 : vector<1x16x1xf32> to vector<1x16x64xf32>
    %245 = vector.broadcast %243 : vector<1x1x64xf32> to vector<1x16x64xf32>
    %246 = arith.mulf %244, %245 : vector<1x16x64xf32>
    %247 = vector.shape_cast %246 : vector<1x16x64xf32> to vector<16x64xf32>
    %248 = arith.mulf %240, %224 : vector<16x64xf32>
    %249 = arith.addf %248, %247 : vector<16x64xf32>
    %cst_87 = arith.constant dense<0.000000e+00> : vector<1x64xf32>
    %250 = tpu.matmul %237, %249, %cst_87 {dimension_numbers = #tpu.dot_dimension_numbers<[1], [0], [0], [1], [0, 0, 1, 1], [], []>} : vector<1x16xf32>, vector<16x64xf32>, vector<1x64xf32> -> vector<1x64xf32>
    %251 = arith.mulf %78, %233 : vector<1x64xf32>
    %252 = arith.addf %250, %251 : vector<1x64xf32>
    %253 = arith.index_cast %c6_i32 : i32 to index
    %c0_88 = arith.constant 0 : index
    %254 = vector.load %arg17[%253, %c0_88] : memref<8x64xf32, #tpu.memory_space<vmem>>, vector<1x64xf32>
    tpu.vector_store %arg17[%253, %c0_88], %252 {strides = array<i32>} : memref<8x64xf32, #tpu.memory_space<vmem>>, vector<1x64xf32>,
    %c7_i32 = arith.constant 7 : i32
    %255 = arith.index_cast %c7_i32 : i32 to index
    %c0_89 = arith.constant 0 : index
    %256 = vector.load %arg14[%255, %c0_89] : memref<8x64xf32, #tpu.memory_space<vmem>>, vector<1x64xf32>
    %257 = arith.index_cast %c7_i32 : i32 to index
    %c0_90 = arith.constant 0 : index
    %258 = vector.load %arg13[%257, %c0_90] : memref<8x64xf32, #tpu.memory_space<vmem>>, vector<1x64xf32>
    %259 = arith.index_cast %c7_i32 : i32 to index
    %c0_91 = arith.constant 0 : index
    %260 = vector.load %arg15[%259, %c0_91] : memref<8x16xf32, #tpu.memory_space<vmem>>, vector<1x16xf32>
    %261 = arith.index_cast %c7_i32 : i32 to index
    %c0_92 = arith.constant 0 : index
    %262 = vector.load %arg16[%261, %c0_92] : memref<8x16xf32, #tpu.memory_space<vmem>>, vector<1x16xf32>
    %263 = vector.broadcast %256 : vector<1x64xf32> to vector<16x64xf32>
    %264 = arith.mulf %263, %77 : vector<16x64xf32>
    %265 = math.exp %264 : vector<16x64xf32>
    %266 = vector.shape_cast %260 : vector<1x16xf32> to vector<1x16x1xf32>
    %267 = arith.mulf %256, %258 : vector<1x64xf32>
    %268 = vector.shape_cast %267 : vector<1x64xf32> to vector<1x1x64xf32>
    %269 = vector.broadcast %266 : vector<1x16x1xf32> to vector<1x16x64xf32>
    %270 = vector.broadcast %268 : vector<1x1x64xf32> to vector<1x16x64xf32>
    %271 = arith.mulf %269, %270 : vector<1x16x64xf32>
    %272 = vector.shape_cast %271 : vector<1x16x64xf32> to vector<16x64xf32>
    %273 = arith.mulf %265, %249 : vector<16x64xf32>
    %274 = arith.addf %273, %272 : vector<16x64xf32>
    %cst_93 = arith.constant dense<0.000000e+00> : vector<1x64xf32>
    %275 = tpu.matmul %262, %274, %cst_93 {dimension_numbers = #tpu.dot_dimension_numbers<[1], [0], [0], [1], [0, 0, 1, 1], [], []>} : vector<1x16xf32>, vector<16x64xf32>, vector<1x64xf32> -> vector<1x64xf32>
    %276 = arith.mulf %78, %258 : vector<1x64xf32>
    %277 = arith.addf %275, %276 : vector<1x64xf32>
    %278 = arith.index_cast %c7_i32 : i32 to index
    %c0_94 = arith.constant 0 : index
    %279 = vector.load %arg17[%278, %c0_94] : memref<8x64xf32, #tpu.memory_space<vmem>>, vector<1x64xf32>
    tpu.vector_store %arg17[%278, %c0_94], %277 {strides = array<i32>} : memref<8x64xf32, #tpu.memory_space<vmem>>, vector<1x64xf32>,
    %c8_i32 = arith.constant 8 : i32
    %c0_95 = arith.constant 0 : index
    %c0_96 = arith.constant 0 : index
    %280 = vector.load %arg17[%c0_95, %c0_96] : memref<8x64xf32, #tpu.memory_space<vmem>>, vector<8x64xf32>
    %cst_97 = arith.constant 0.000000e+00 : f32
    %281 = vector.broadcast %cst_97 : f32 to vector<8x64xf32>
    %282 = arith.subf %281, %17 : vector<8x64xf32>
    %283 = math.exp %282 : vector<8x64xf32>
    %cst_98 = arith.constant 1.000000e+00 : f32
    %284 = vector.broadcast %cst_98 : f32 to vector<8x64xf32>
    %285 = arith.addf %284, %283 : vector<8x64xf32>
    %286 = tpu.reciprocal %285 {approx = true} : vector<8x64xf32> -> vector<8x64xf32>
    %287 = arith.mulf %17, %286 : vector<8x64xf32>
    %288 = arith.mulf %280, %287 : vector<8x64xf32>
    %c0_99 = arith.constant 0 : index
    %c0_100 = arith.constant 0 : index
    %289 = vector.load %arg10[%c0_99, %c0_100] : memref<64x32xf32, #tpu.memory_space<vmem>>, vector<64x32xf32>
    %cst_101 = arith.constant dense<0.000000e+00> : vector<8x32xf32>
    %290 = tpu.matmul %288, %289, %cst_101 {dimension_numbers = #tpu.dot_dimension_numbers<[1], [0], [0], [1], [0, 0, 1, 1], [], []>} : vector<8x64xf32>, vector<64x32xf32>, vector<8x32xf32> -> vector<8x32xf32>
    %291 = arith.addf %1, %290 : vector<8x32xf32>
    %292 = vector.shape_cast %291 : vector<8x32xf32> to vector<1x8x32xf32>
    %c0_102 = arith.constant 0 : index
    %c0_103 = arith.constant 0 : index
    %c0_104 = arith.constant 0 : index
    %293 = vector.load %arg11[%c0_102, %c0_103, %c0_104] : memref<1x8x32xf32, #tpu.memory_space<vmem>>, vector<1x8x32xf32>
    tpu.vector_store %arg11[%c0_102, %c0_103, %c0_104], %292 {strides = array<i32>} : memref<1x8x32xf32, #tpu.memory_space<vmem>>, vector<1x8x32xf32>,
    return
  }
  func.func @transform_0(%arg0: i32) -> (i32, i32, i32) {
    %c0_i32 = arith.constant 0 : i32
    %c0_i32_0 = arith.constant 0 : i32
    %c0_i32_1 = arith.constant 0 : i32
    return %arg0, %c0_i32, %c0_i32_0 : i32, i32, i32
  }
  func.func @transform_1(%arg0: i32) -> (i32, i32) {
    %c0_i32 = arith.constant 0 : i32
    %c0_i32_0 = arith.constant 0 : i32
    %c0_i32_1 = arith.constant 0 : i32
    return %c0_i32, %c0_i32_0 : i32, i32
  }
  func.func @transform_2(%arg0: i32) -> (i32, i32) {
    %c0_i32 = arith.constant 0 : i32
    %c0_i32_0 = arith.constant 0 : i32
    %c0_i32_1 = arith.constant 0 : i32
    return %c0_i32, %c0_i32_0 : i32, i32
  }
  func.func @transform_3(%arg0: i32) -> (i32, i32) {
    %c0_i32 = arith.constant 0 : i32
    %c0_i32_0 = arith.constant 0 : i32
    %c0_i32_1 = arith.constant 0 : i32
    return %c0_i32, %c0_i32_0 : i32, i32
  }
  func.func @transform_4(%arg0: i32) -> (i32, i32) {
    %c0_i32 = arith.constant 0 : i32
    %c0_i32_0 = arith.constant 0 : i32
    %c0_i32_1 = arith.constant 0 : i32
    return %c0_i32, %c0_i32_0 : i32, i32
  }
  func.func @transform_5(%arg0: i32) -> (i32, i32) {
    %c0_i32 = arith.constant 0 : i32
    %c0_i32_0 = arith.constant 0 : i32
    %c0_i32_1 = arith.constant 0 : i32
    return %c0_i32, %c0_i32_0 : i32, i32
  }
  func.func @transform_6(%arg0: i32) -> (i32, i32) {
    %c0_i32 = arith.constant 0 : i32
    %c0_i32_0 = arith.constant 0 : i32
    %c0_i32_1 = arith.constant 0 : i32
    return %c0_i32, %c0_i32_0 : i32, i32
  }
  func.func @transform_7(%arg0: i32) -> (i32, i32) {
    %c0_i32 = arith.constant 0 : i32
    %c0_i32_0 = arith.constant 0 : i32
    %c0_i32_1 = arith.constant 0 : i32
    return %c0_i32, %c0_i32_0 : i32, i32
  }
  func.func @transform_8(%arg0: i32) -> (i32, i32) {
    %c0_i32 = arith.constant 0 : i32
    %c0_i32_0 = arith.constant 0 : i32
    %c0_i32_1 = arith.constant 0 : i32
    return %c0_i32, %c0_i32_0 : i32, i32
  }
  func.func @transform_9(%arg0: i32) -> (i32, i32) {
    %c0_i32 = arith.constant 0 : i32
    %c0_i32_0 = arith.constant 0 : i32
    %c0_i32_1 = arith.constant 0 : i32
    return %c0_i32, %c0_i32_0 : i32, i32
  }
  func.func @transform_10(%arg0: i32) -> (i32, i32, i32) {
    %c0_i32 = arith.constant 0 : i32
    %c0_i32_0 = arith.constant 0 : i32
    %c0_i32_1 = arith.constant 0 : i32
    return %arg0, %c0_i32, %c0_i32_0 : i32, i32, i32
  }
}

module attributes {stable_mosaic.version = 11 : i64} {
  func.func @_linear_kernel(%arg0: i32, %arg1: memref<16x32xf32, #tpu.memory_space<vmem>>, %arg2: memref<32x4xf32, #tpu.memory_space<vmem>>, %arg3: memref<1x4xf32, #tpu.memory_space<vmem>>, %arg4: memref<16x4xf32, #tpu.memory_space<vmem>>) attributes {dimension_semantics = [#tpu.dimension_semantics<parallel>], iteration_bounds = array<i64: 1>, scalar_prefetch = 0 : i64, scratch_operands = 0 : i64, tpu.core_type = #tpu.core_type<tc>, window_params = [{transform_indices = @transform_0, window_bounds = array<i64: 16, 32>}, {pipeline_mode = #tpu.pipeline_mode<synchronous>, transform_indices = @transform_1, window_bounds = array<i64: 32, 4>}, {pipeline_mode = #tpu.pipeline_mode<synchronous>, transform_indices = @transform_2, window_bounds = array<i64: 1, 4>}, {transform_indices = @transform_3, window_bounds = array<i64: 16, 4>}]} {
    %c0 = arith.constant 0 : index
    %c0_0 = arith.constant 0 : index
    %0 = vector.load %arg1[%c0, %c0_0] : memref<16x32xf32, #tpu.memory_space<vmem>>, vector<16x32xf32>
    %c0_1 = arith.constant 0 : index
    %c0_2 = arith.constant 0 : index
    %1 = vector.load %arg2[%c0_1, %c0_2] : memref<32x4xf32, #tpu.memory_space<vmem>>, vector<32x4xf32>
    %cst = arith.constant dense<0.000000e+00> : vector<16x4xf32>
    %2 = tpu.matmul %0, %1, %cst {dimension_numbers = #tpu.dot_dimension_numbers<[1], [0], [0], [1], [0, 0, 1, 1], [], []>} : vector<16x32xf32>, vector<32x4xf32>, vector<16x4xf32> -> vector<16x4xf32>
    %c0_3 = arith.constant 0 : index
    %c0_4 = arith.constant 0 : index
    %3 = vector.load %arg3[%c0_3, %c0_4] : memref<1x4xf32, #tpu.memory_space<vmem>>, vector<1x4xf32>
    %4 = vector.broadcast %3 : vector<1x4xf32> to vector<16x4xf32>
    %5 = arith.addf %2, %4 : vector<16x4xf32>
    %6 = math.tanh %5 : vector<16x4xf32>
    %c0_5 = arith.constant 0 : index
    %c0_6 = arith.constant 0 : index
    %7 = vector.load %arg4[%c0_5, %c0_6] : memref<16x4xf32, #tpu.memory_space<vmem>>, vector<16x4xf32>
    tpu.vector_store %arg4[%c0_5, %c0_6], %6 {strides = array<i32>} : memref<16x4xf32, #tpu.memory_space<vmem>>, vector<16x4xf32>,
    return
  }
  func.func @transform_0(%arg0: i32) -> (i32, i32) {
    %c0_i32 = arith.constant 0 : i32
    %c0_i32_0 = arith.constant 0 : i32
    return %arg0, %c0_i32 : i32, i32
  }
  func.func @transform_1(%arg0: i32) -> (i32, i32) {
    %c0_i32 = arith.constant 0 : i32
    %c0_i32_0 = arith.constant 0 : i32
    %c0_i32_1 = arith.constant 0 : i32
    return %c0_i32, %c0_i32_0 : i32, i32
  }
  func.func @transform_2(%arg0: i32) -> (i32, i32) {
    %c0_i32 = arith.constant 0 : i32
    %c0_i32_0 = arith.constant 0 : i32
    %c0_i32_1 = arith.constant 0 : i32
    return %c0_i32, %c0_i32_0 : i32, i32
  }
  func.func @transform_3(%arg0: i32) -> (i32, i32) {
    %c0_i32 = arith.constant 0 : i32
    %c0_i32_0 = arith.constant 0 : i32
    return %arg0, %c0_i32 : i32, i32
  }
}

</mosaic_0001>

<llo_original>
// kernel: net_forward.7
$region0: #{net_forward.7}
  #allocation0 [shape = 'u32[]', space=smem, size = 0x4, offset = 0x4, fixed_abs, tag = 'smem constant byte address 0x4 - core index']
  #allocation1 [shape = 'u32[144,128]{1,0:T(1,128)}', space=vmem, size = 0x12000, scoped, tag = 'internal scratch']
  %s0 = inlined_call_operand.vmem [shape: f32[16,32], index: 0, kind: input, shape index: {}]
  %s1 = inlined_call_operand.vmem [shape: f32[32,4], index: 1, kind: input, shape index: {}]
  %s2 = inlined_call_operand.vmem [shape: f32[1,4], index: 2, kind: input, shape index: {}]
  %s3 = inlined_call_operand.vmem [shape: f32[16,4], index: 3, kind: output, shape index: {}]
  %s4 = sld [smem:[#allocation0]]
  $region22: #{net_forward.7} parent=0
    _
  %s6 = ssub.s32 1, %s4
  %s7 = scalar_select 0, %s6, %s4
  // Predicated region
  $region2: #{net_forward.7} parent=0 // pred_check
    _
  $region3: #{net_forward.7} parent=0 // pred_check_branch
    %9 = sbr.rel (0) target = $region5
  $region4: #{net_forward.7} parent=0 // pred_region
    _
  $region5: #{net_forward.7} parent=0 // pred_fallthru
    _
  // Predicated region
  $region6: #{net_forward.7} parent=0 // pred_check
    _
  $region7: #{net_forward.7} parent=0 // pred_check_branch
    %11 = sbr.rel (0) target = $region9
  $region8: #{net_forward.7} parent=0 // pred_region
    _
  $region9: #{net_forward.7} parent=0 // pred_fallthru
    _
  // Predicated region
  $region10: #{net_forward.7} parent=0 // pred_check
    _
  $region11: #{net_forward.7} parent=0 // pred_check_branch
    %13 = sbr.rel (0) target = $region13
  $region12: #{net_forward.7} parent=0 // pred_region
    _
  $region13: #{net_forward.7} parent=0 // pred_fallthru
    _
  %v14 = vld [vmem:[%s0] sm:$0xff]
  %v15 = vld [vmem:[%s0 + $0x8] sm:$0xff]
  %v16 = vld [vmem:[%s1] sm:$0xff]
  %v17 = vld [vmem:[%s1 + $0x8] sm:$0xff]
  %v18 = vld [vmem:[%s1 + $0x10] sm:$0xff]
  %v19 = vld [vmem:[%s1 + $0x18] sm:$0xff]
  %v20 = vld [vmem:[%s2] sm:$0x1]
  %v22 = vlaneseq
  %v23 = vshrl.u32 %v22, 7
  %v24 = vsub.s32 0, %v23
  %v25 = vrot.slane %v20, %v24
  %vm27 = vcmask 261120
  %v29 = vsel %vm27, %v14, 0
  %v32 = vsel %vm27, %v15, 0
  %34 = vmatprep.subr.mxu0 0.0
  %35 = vmatpush1.msra.mxu0 %v16
  %36 = vmatprep.subr.mxu0 0.0
  %37 = vmatpush1.msra.mxu0 %v17
  %38 = vmatprep.subr.mxu0 0.0
  %39 = vmatpush1.msra.mxu0 %v18
  %40 = vmatprep.subr.mxu0 0.0
  %41 = vmatpush1.msra.mxu0 %v19
  %42 = vmatprep.subr.mxu0 0.0
  %43 = vmatpush1.msra.mxu0 0.0
  %44 = vmatprep.subr.mxu0 0.0
  %45 = vmatpush1.msra.mxu0 0.0
  %46 = vmatprep.subr.mxu0 0.0
  %47 = vmatpush1.msra.mxu0 0.0
  %48 = vmatprep.subr.mxu0 0.0
  %49 = vmatpush1.msra.mxu0 0.0
  %50 = vmatprep.subr.mxu0 0.0
  %51 = vmatpush1.msra.mxu0 0.0
  %52 = vmatprep.subr.mxu0 0.0
  %53 = vmatpush1.msra.mxu0 0.0
  %54 = vmatprep.subr.mxu0 0.0
  %55 = vmatpush1.msra.mxu0 0.0
  %56 = vmatprep.subr.mxu0 0.0
  %57 = vmatpush1.msra.mxu0 0.0
  %58 = vmatprep.subr.mxu0 0.0
  %59 = vmatpush1.msra.mxu0 0.0
  %60 = vmatprep.subr.mxu0 0.0
  %61 = vmatpush1.msra.mxu0 0.0
  %62 = vmatprep.subr.mxu0 0.0
  %63 = vmatpush1.msra.mxu0 0.0
  %64 = vmatprep.subr.mxu0 0.0
  %65 = vmatpush1.msra.mxu0 0.0
  %66 = vmatprep.subr.mxu0 0.0
  %67 = vmatpush1.msra.mxu0 0.0
  %68 = vmatprep.subr.mxu0 0.0
  %69 = vmatpush1.msra.mxu0 0.0
  %70 = vmatprep.subr.mxu0 0.0
  %71 = vmatpush1.msra.mxu0 0.0
  %72 = vmatprep.subr.mxu0 0.0
  %73 = vmatpush1.msra.mxu0 0.0
  %74 = vmatprep.subr.mxu0 0.0
  %75 = vmatpush1.msra.mxu0 0.0
  %76 = vmatprep.subr.mxu0 0.0
  %77 = vmatpush1.msra.mxu0 0.0
  %78 = vmatprep.subr.mxu0 0.0
  %79 = vmatpush1.msra.mxu0 0.0
  %80 = vmatprep.subr.mxu0 0.0
  %81 = vmatpush1.msra.mxu0 0.0
  %82 = vmatprep.subr.mxu0 0.0
  %83 = vmatpush1.msra.mxu0 0.0
  %84 = vmatprep.subr.mxu0 0.0
  %85 = vmatpush1.msra.mxu0 0.0
  %86 = vmatprep.subr.mxu0 0.0
  %87 = vmatpush1.msra.mxu0 0.0
  %88 = vmatprep.subr.mxu0 0.0
  %89 = vmatpush1.msra.mxu0 0.0
  %90 = vmatprep.subr.mxu0 0.0
  %91 = vmatpush1.msra.mxu0 0.0
  %92 = vmatprep.subr.mxu0 0.0
  %93 = vmatpush1.msra.mxu0 0.0
  %94 = vmatprep.subr.mxu0 0.0
  %95 = vmatpush1.msra.mxu0 0.0
  %96 = vmatprep.subr.mxu0 0.0
  %97 = vmatpush1.msra.mxu0 0.0
  %98 = vmatprep.mubr.f32.mxu0 0.0
  %99 = vmatmul.mubr.f32.gmra.mrb[0].mxu0 %v29
  %v100 = vpop.f32.mrb[0].mxu0
  %v101 = vadd.f32 %v25, %v100
  %v102 = vpop.f32.mrb[0].mxu0
  %103 = vmatprep.mubr.f32.mxu0 0.0
  %104 = vmatmul.mubr.f32.gmra.mrb[0].mxu0 %v32
  %v105 = vpop.f32.mrb[0].mxu0
  %v106 = vadd.f32 %v25, %v105
  %v107 = vpop.f32.mrb[0].mxu0
  %108 = vdwg.mxu0
  %v109 = vtanh.pop %v101
  %v110 = vtanh.pop %v106
  %vm111 = vcmask 31744
  %112 = vst.msk [vmem:[%s3] sm:$0xff] %vm111, %v109
  %113 = vst.msk [vmem:[%s3 + $0x8] sm:$0xff] %vm111, %v110
  // Predicated region
  $region14: #{net_forward.7} parent=0 // pred_check
    _
  $region15: #{net_forward.7} parent=0 // pred_check_branch
    %115 = sbr.rel (0) target = $region17
  $region16: #{net_forward.7} parent=0 // pred_region
    _
  $region17: #{net_forward.7} parent=0 // pred_fallthru
    _
  // Predicated region
  $region18: #{net_forward.7} parent=0 // pred_check
    _
  $region19: #{net_forward.7} parent=0 // pred_check_branch
    %117 = sbr.rel (0) target = $region21
  $region20: #{net_forward.7} parent=0 // pred_region
    _
  $region21: #{net_forward.7} parent=0 // pred_fallthru
    _

// kernel: net_forward.4
$region0: #{net_forward.4}
  #allocation0 [shape = 'u32[]', space=smem, size = 0x4, offset = 0x4, fixed_abs, tag = 'smem constant byte address 0x4 - core index']
  #allocation1 [shape = 'u32[144,128]{1,0:T(1,128)}', space=vmem, size = 0x12000, scoped, tag = 'internal scratch']
  %s0 = inlined_call_operand.vmem [shape: f32[16,8], index: 0, kind: input, shape index: {}]
  %s1 = inlined_call_operand.vmem [shape: f32[8,32], index: 1, kind: input, shape index: {}]
  %s2 = inlined_call_operand.vmem [shape: f32[1,32], index: 2, kind: input, shape index: {}]
  %s3 = inlined_call_operand.vmem [shape: f32[16,32], index: 3, kind: output, shape index: {}]
  %s4 = sld [smem:[#allocation0]]
  $region22: #{net_forward.4} parent=0
    _
  %s6 = ssub.s32 1, %s4
  %s7 = scalar_select 0, %s6, %s4
  // Predicated region
  $region2: #{net_forward.4} parent=0 // pred_check
    _
  $region3: #{net_forward.4} parent=0 // pred_check_branch
    %9 = sbr.rel (0) target = $region5
  $region4: #{net_forward.4} parent=0 // pred_region
    _
  $region5: #{net_forward.4} parent=0 // pred_fallthru
    _
  // Predicated region
  $region6: #{net_forward.4} parent=0 // pred_check
    _
  $region7: #{net_forward.4} parent=0 // pred_check_branch
    %11 = sbr.rel (0) target = $region9
  $region8: #{net_forward.4} parent=0 // pred_region
    _
  $region9: #{net_forward.4} parent=0 // pred_fallthru
    _
  // Predicated region
  $region10: #{net_forward.4} parent=0 // pred_check
    _
  $region11: #{net_forward.4} parent=0 // pred_check_branch
    %13 = sbr.rel (0) target = $region13
  $region12: #{net_forward.4} parent=0 // pred_region
    _
  $region13: #{net_forward.4} parent=0 // pred_fallthru
    _
  %v14 = vld [vmem:[%s0] sm:$0xff]
  %v15 = vld [vmem:[%s0 + $0x8] sm:$0xff]
  %v16 = vld [vmem:[%s1] sm:$0xff]
  %v17 = vld [vmem:[%s2] sm:$0x1]
  %v19 = vlaneseq
  %v20 = vshrl.u32 %v19, 7
  %v21 = vsub.s32 0, %v20
  %v22 = vrot.slane %v17, %v21
  %vm24 = vcmask 64512
  %v26 = vsel %vm24, %v14, 0
  %v29 = vsel %vm24, %v15, 0
  %31 = vmatprep.subr.mxu0 0.0
  %32 = vmatpush1.msra.mxu0 %v16
  %33 = vmatprep.subr.mxu0 0.0
  %34 = vmatpush1.msra.mxu0 0.0
  %35 = vmatprep.subr.mxu0 0.0
  %36 = vmatpush1.msra.mxu0 0.0
  %37 = vmatprep.subr.mxu0 0.0
  %38 = vmatpush1.msra.mxu0 0.0
  %39 = vmatprep.subr.mxu0 0.0
  %40 = vmatpush1.msra.mxu0 0.0
  %41 = vmatprep.subr.mxu0 0.0
  %42 = vmatpush1.msra.mxu0 0.0
  %43 = vmatprep.subr.mxu0 0.0
  %44 = vmatpush1.msra.mxu0 0.0
  %45 = vmatprep.subr.mxu0 0.0
  %46 = vmatpush1.msra.mxu0 0.0
  %47 = vmatprep.subr.mxu0 0.0
  %48 = vmatpush1.msra.mxu0 0.0
  %49 = vmatprep.subr.mxu0 0.0
  %50 = vmatpush1.msra.mxu0 0.0
  %51 = vmatprep.subr.mxu0 0.0
  %52 = vmatpush1.msra.mxu0 0.0
  %53 = vmatprep.subr.mxu0 0.0
  %54 = vmatpush1.msra.mxu0 0.0
  %55 = vmatprep.subr.mxu0 0.0
  %56 = vmatpush1.msra.mxu0 0.0
  %57 = vmatprep.subr.mxu0 0.0
  %58 = vmatpush1.msra.mxu0 0.0
  %59 = vmatprep.subr.mxu0 0.0
  %60 = vmatpush1.msra.mxu0 0.0
  %61 = vmatprep.subr.mxu0 0.0
  %62 = vmatpush1.msra.mxu0 0.0
  %63 = vmatprep.subr.mxu0 0.0
  %64 = vmatpush1.msra.mxu0 0.0
  %65 = vmatprep.subr.mxu0 0.0
  %66 = vmatpush1.msra.mxu0 0.0
  %67 = vmatprep.subr.mxu0 0.0
  %68 = vmatpush1.msra.mxu0 0.0
  %69 = vmatprep.subr.mxu0 0.0
  %70 = vmatpush1.msra.mxu0 0.0
  %71 = vmatprep.subr.mxu0 0.0
  %72 = vmatpush1.msra.mxu0 0.0
  %73 = vmatprep.subr.mxu0 0.0
  %74 = vmatpush1.msra.mxu0 0.0
  %75 = vmatprep.subr.mxu0 0.0
  %76 = vmatpush1.msra.mxu0 0.0
  %77 = vmatprep.subr.mxu0 0.0
  %78 = vmatpush1.msra.mxu0 0.0
  %79 = vmatprep.subr.mxu0 0.0
  %80 = vmatpush1.msra.mxu0 0.0
  %81 = vmatprep.subr.mxu0 0.0
  %82 = vmatpush1.msra.mxu0 0.0
  %83 = vmatprep.subr.mxu0 0.0
  %84 = vmatpush1.msra.mxu0 0.0
  %85 = vmatprep.subr.mxu0 0.0
  %86 = vmatpush1.msra.mxu0 0.0
  %87 = vmatprep.subr.mxu0 0.0
  %88 = vmatpush1.msra.mxu0 0.0
  %89 = vmatprep.subr.mxu0 0.0
  %90 = vmatpush1.msra.mxu0 0.0
  %91 = vmatprep.subr.mxu0 0.0
  %92 = vmatpush1.msra.mxu0 0.0
  %93 = vmatprep.subr.mxu0 0.0
  %94 = vmatpush1.msra.mxu0 0.0
  %95 = vmatprep.mubr.f32.mxu0 0.0
  %96 = vmatmul.mubr.f32.gmra.mrb[0].mxu0 %v26
  %v97 = vpop.f32.mrb[0].mxu0
  %v98 = vadd.f32 %v22, %v97
  %v99 = vpop.f32.mrb[0].mxu0
  %100 = vmatprep.mubr.f32.mxu0 0.0
  %101 = vmatmul.mubr.f32.gmra.mrb[0].mxu0 %v29
  %v102 = vpop.f32.mrb[0].mxu0
  %v103 = vadd.f32 %v22, %v102
  %v104 = vpop.f32.mrb[0].mxu0
  %105 = vdwg.mxu0
  %vm106 = vcmask 261120
  %107 = vst.msk [vmem:[%s3] sm:$0xff] %vm106, %v98
  %108 = vst.msk [vmem:[%s3 + $0x8] sm:$0xff] %vm106, %v103
  // Predicated region
  $region14: #{net_forward.4} parent=0 // pred_check
    _
  $region15: #{net_forward.4} parent=0 // pred_check_branch
    %110 = sbr.rel (0) target = $region17
  $region16: #{net_forward.4} parent=0 // pred_region
    _
  $region17: #{net_forward.4} parent=0 // pred_fallthru
    _
  // Predicated region
  $region18: #{net_forward.4} parent=0 // pred_check
    _
  $region19: #{net_forward.4} parent=0 // pred_check_branch
    %112 = sbr.rel (0) target = $region21
  $region20: #{net_forward.4} parent=0 // pred_region
    _
  $region21: #{net_forward.4} parent=0 // pred_fallthru
    _

// kernel: net_forward.5
$region0: #{net_forward.5}
  #allocation0 [shape = 'u32[]', space=smem, size = 0x4, offset = 0x4, fixed_abs, tag = 'smem constant byte address 0x4 - core index']
  #allocation1 [shape = 'u32[144,128]{1,0:T(1,128)}', space=vmem, size = 0x12000, scoped, tag = 'internal scratch']
  #allocation2 [shape = 'f32[11,64]{1,0:T(8,128)}', space=vmem, size = 0x2000, scoped, tag = 'scratch operand']
  #allocation3 [shape = 'f32[8,64]{1,0:T(8,128)}', space=vmem, size = 0x1000, scoped, tag = 'scratch operand']
  #allocation4 [shape = 'f32[8,64]{1,0:T(8,128)}', space=vmem, size = 0x1000, scoped, tag = 'scratch operand']
  #allocation5 [shape = 'f32[8,16]{1,0:T(8,128)}', space=vmem, size = 0x1000, scoped, tag = 'scratch operand']
  #allocation6 [shape = 'f32[8,16]{1,0:T(8,128)}', space=vmem, size = 0x1000, scoped, tag = 'scratch operand']
  #allocation7 [shape = 'f32[8,64]{1,0:T(8,128)}', space=vmem, size = 0x1000, scoped, tag = 'scratch operand']
  %s0 = inlined_call_operand.vmem [shape: f32[2,8,32], index: 0, kind: input, shape index: {}]
  %s1 = inlined_call_operand.vmem [shape: f32[1,32], index: 1, kind: input, shape index: {}]
  %s2 = inlined_call_operand.vmem [shape: f32[32,128], index: 2, kind: input, shape index: {}]
  %s3 = inlined_call_operand.vmem [shape: f32[4,64], index: 3, kind: input, shape index: {}]
  %s4 = inlined_call_operand.vmem [shape: f32[1,64], index: 4, kind: input, shape index: {}]
  %s5 = inlined_call_operand.vmem [shape: f32[64,96], index: 5, kind: input, shape index: {}]
  %s6 = inlined_call_operand.vmem [shape: f32[1,96], index: 6, kind: input, shape index: {}]
  %s7 = inlined_call_operand.vmem [shape: f32[16,64], index: 7, kind: input, shape index: {}]
  %s8 = inlined_call_operand.vmem [shape: f32[1,64], index: 8, kind: input, shape index: {}]
  %s9 = inlined_call_operand.vmem [shape: f32[64,32], index: 9, kind: input, shape index: {}]
  %s10 = inlined_call_operand.vmem [shape: f32[2,8,32], index: 10, kind: output, shape index: {}]
  %s11 = sld [smem:[#allocation0]]
  $region73: #{net_forward.5} parent=0
    _
  %s13 = ssub.s32 1, %s11
  %s14 = scalar_select 0, %s13, %s11
  loop: start=0, step=1, limit=4
  $region2: #{net_forward.5} parent=0 // loop_pre_header
    _
  $region3: #{net_forward.5} parent=0 // loop_header
    %s16 = sphi 0, %s20
    %p17 = scmp.ge.s32.totalorder %s16, 4
    %s26 = sphi 0, %s28
    %s29 = sphi 0, %s26
    %s30 = sphi 0, %s29
    %s46 = sphi 0, %s30
    %s50 = sphi 0, %s50
    %s52 = sphi 0, %s50
    %s53 = sphi 0, %s52
    %s67 = sphi 0, %s53
    %s71 = sphi 0, %s71
    %s73 = sphi 0, %s71
    %s74 = sphi 0, %s73
    %s88 = sphi 0, %s74
    %s92 = sphi 0, %s92
    %s94 = sphi 0, %s92
    %s95 = sphi 0, %s94
    %s109 = sphi 0, %s95
    %s113 = sphi 0, %s113
    %s115 = sphi 0, %s113
    %s116 = sphi 0, %s115
    %s130 = sphi 0, %s116
    %s134 = sphi 0, %s134
    %s136 = sphi 0, %s134
    %s137 = sphi 0, %s136
    %s151 = sphi 0, %s137
    %s155 = sphi 0, %s155
    %s157 = sphi 0, %s155
    %s158 = sphi 0, %s157
    %s172 = sphi 0, %s158
    %s176 = sphi 0, %s176
    %s178 = sphi 0, %s176
    %s179 = sphi 0, %s178
    %s193 = sphi 0, %s179
    %s197 = sphi 0, %s197
    %s199 = sphi 0, %s197
    %s200 = sphi 0, %s199
    %s214 = sphi 0, %s200
    %s218 = sphi 0, %s218
    %s220 = sphi 0, %s218
    %s221 = sphi 0, %s220
    %s235 = sphi 0, %s221
    %s241 = sphi 0, %s243
    %s244 = sphi 0, %s241
    %s245 = sphi 0, %s244
    %s261 = sphi 0, %s245
  $region4: #{net_forward.5} parent=0 // loop_header_branch
    %19 = sbr.rel (%p17) target = $region8
  $region5: #{net_forward.5} parent=0 // loop_body
    %s21 = ssub.s32 %s16, 1
    %s22 = ssub.s32 %s16, 2
    %s23 = sadd.s32 %s16, 1
    %s24 = ssub.s32 %s16, %s23
    %p25 = scmp.eq.s32.totalorder %s24, 0
    %s27 = sadd.s32 %s26, 1
    %s28 = scalar_select %p25, %s26, %s27
    %p31 = pneg %p25
    %p32 = scmp.eq.s32.totalorder %s16, 1
    %p33 = por %p31, %p32
    %p34 = scmp.ne.s32.totalorder %s26, %s29
    %p35 = scmp.eq.s32.totalorder %s16, 0
    %p36 = por %p34, %p35
    %p37 = scmp.ne.s32.totalorder %s26, %s29
    %p38 = scmp.eq.s32.totalorder %s21, 1
    %p39 = por %p37, %p38
    %p40 = scmp.ne.s32.totalorder %s29, %s30
    %p41 = scmp.eq.s32.totalorder %s21, 0
    %p42 = por %p40, %p41
    %p43 = scmp.ne.s32.totalorder %s29, %s30
    %p44 = scmp.eq.s32.totalorder %s22, 1
    %p45 = por %p43, %p44
    %p47 = scmp.ne.s32.totalorder %s30, %s46
    %p48 = scmp.eq.s32.totalorder %s22, 0
    %p49 = por %p47, %p48
    %s51 = sadd.s32 %s50, 1
    %p54 = scmp.eq.s32.totalorder %s16, 1
    %p55 = scmp.ne.s32.totalorder %s50, %s52
    %p56 = scmp.eq.s32.totalorder %s16, 0
    %p57 = por %p55, %p56
    %p58 = scmp.ne.s32.totalorder %s50, %s52
    %p59 = scmp.eq.s32.totalorder %s21, 1
    %p60 = por %p58, %p59
    %p61 = scmp.ne.s32.totalorder %s52, %s53
    %p62 = scmp.eq.s32.totalorder %s21, 0
    %p63 = por %p61, %p62
    %p64 = scmp.ne.s32.totalorder %s52, %s53
    %p65 = scmp.eq.s32.totalorder %s22, 1
    %p66 = por %p64, %p65
    %p68 = scmp.ne.s32.totalorder %s53, %s67
    %p69 = scmp.eq.s32.totalorder %s22, 0
    %p70 = por %p68, %p69
    %s72 = sadd.s32 %s71, 1
    %p75 = scmp.eq.s32.totalorder %s16, 1
    %p76 = scmp.ne.s32.totalorder %s71, %s73
    %p77 = scmp.eq.s32.totalorder %s16, 0
    %p78 = por %p76, %p77
    %p79 = scmp.ne.s32.totalorder %s71, %s73
    %p80 = scmp.eq.s32.totalorder %s21, 1
    %p81 = por %p79, %p80
    %p82 = scmp.ne.s32.totalorder %s73, %s74
    %p83 = scmp.eq.s32.totalorder %s21, 0
    %p84 = por %p82, %p83
    %p85 = scmp.ne.s32.totalorder %s73, %s74
    %p86 = scmp.eq.s32.totalorder %s22, 1
    %p87 = por %p85, %p86
    %p89 = scmp.ne.s32.totalorder %s74, %s88
    %p90 = scmp.eq.s32.totalorder %s22, 0
    %p91 = por %p89, %p90
    %s93 = sadd.s32 %s92, 1
    %p96 = scmp.eq.s32.totalorder %s16, 1
    %p97 = scmp.ne.s32.totalorder %s92, %s94
    %p98 = scmp.eq.s32.totalorder %s16, 0
    %p99 = por %p97, %p98
    %p100 = scmp.ne.s32.totalorder %s92, %s94
    %p101 = scmp.eq.s32.totalorder %s21, 1
    %p102 = por %p100, %p101
    %p103 = scmp.ne.s32.totalorder %s94, %s95
    %p104 = scmp.eq.s32.totalorder %s21, 0
    %p105 = por %p103, %p104
    %p106 = scmp.ne.s32.totalorder %s94, %s95
    %p107 = scmp.eq.s32.totalorder %s22, 1
    %p108 = por %p106, %p107
    %p110 = scmp.ne.s32.totalorder %s95, %s109
    %p111 = scmp.eq.s32.totalorder %s22, 0
    %p112 = por %p110, %p111
    %s114 = sadd.s32 %s113, 1
    %p117 = scmp.eq.s32.totalorder %s16, 1
    %p118 = scmp.ne.s32.totalorder %s113, %s115
    %p119 = scmp.eq.s32.totalorder %s16, 0
    %p120 = por %p118, %p119
    %p121 = scmp.ne.s32.totalorder %s113, %s115
    %p122 = scmp.eq.s32.totalorder %s21, 1
    %p123 = por %p121, %p122
    %p124 = scmp.ne.s32.totalorder %s115, %s116
    %p125 = scmp.eq.s32.totalorder %s21, 0
    %p126 = por %p124, %p125
    %p127 = scmp.ne.s32.totalorder %s115, %s116
    %p128 = scmp.eq.s32.totalorder %s22, 1
    %p129 = por %p127, %p128
    %p131 = scmp.ne.s32.totalorder %s116, %s130
    %p132 = scmp.eq.s32.totalorder %s22, 0
    %p133 = por %p131, %p132
    %s135 = sadd.s32 %s134, 1
    %p138 = scmp.eq.s32.totalorder %s16, 1
    %p139 = scmp.ne.s32.totalorder %s134, %s136
    %p140 = scmp.eq.s32.totalorder %s16, 0
    %p141 = por %p139, %p140
    %p142 = scmp.ne.s32.totalorder %s134, %s136
    %p143 = scmp.eq.s32.totalorder %s21, 1
    %p144 = por %p142, %p143
    %p145 = scmp.ne.s32.totalorder %s136, %s137
    %p146 = scmp.eq.s32.totalorder %s21, 0
    %p147 = por %p145, %p146
    %p148 = scmp.ne.s32.totalorder %s136, %s137
    %p149 = scmp.eq.s32.totalorder %s22, 1
    %p150 = por %p148, %p149
    %p152 = scmp.ne.s32.totalorder %s137, %s151
    %p153 = scmp.eq.s32.totalorder %s22, 0
    %p154 = por %p152, %p153
    %s156 = sadd.s32 %s155, 1
    %p159 = scmp.eq.s32.totalorder %s16, 1
    %p160 = scmp.ne.s32.totalorder %s155, %s157
    %p161 = scmp.eq.s32.totalorder %s16, 0
    %p162 = por %p160, %p161
    %p163 = scmp.ne.s32.totalorder %s155, %s157
    %p164 = scmp.eq.s32.totalorder %s21, 1
    %p165 = por %p163, %p164
    %p166 = scmp.ne.s32.totalorder %s157, %s158
    %p167 = scmp.eq.s32.totalorder %s21, 0
    %p168 = por %p166, %p167
    %p169 = scmp.ne.s32.totalorder %s157, %s158
    %p170 = scmp.eq.s32.totalorder %s22, 1
    %p171 = por %p169, %p170
    %p173 = scmp.ne.s32.totalorder %s158, %s172
    %p174 = scmp.eq.s32.totalorder %s22, 0
    %p175 = por %p173, %p174
    %s177 = sadd.s32 %s176, 1
    %p180 = scmp.eq.s32.totalorder %s16, 1
    %p181 = scmp.ne.s32.totalorder %s176, %s178
    %p182 = scmp.eq.s32.totalorder %s16, 0
    %p183 = por %p181, %p182
    %p184 = scmp.ne.s32.totalorder %s176, %s178
    %p185 = scmp.eq.s32.totalorder %s21, 1
    %p186 = por %p184, %p185
    %p187 = scmp.ne.s32.totalorder %s178, %s179
    %p188 = scmp.eq.s32.totalorder %s21, 0
    %p189 = por %p187, %p188
    %p190 = scmp.ne.s32.totalorder %s178, %s179
    %p191 = scmp.eq.s32.totalorder %s22, 1
    %p192 = por %p190, %p191
    %p194 = scmp.ne.s32.totalorder %s179, %s193
    %p195 = scmp.eq.s32.totalorder %s22, 0
    %p196 = por %p194, %p195
    %s198 = sadd.s32 %s197, 1
    %p201 = scmp.eq.s32.totalorder %s16, 1
    %p202 = scmp.ne.s32.totalorder %s197, %s199
    %p203 = scmp.eq.s32.totalorder %s16, 0
    %p204 = por %p202, %p203
    %p205 = scmp.ne.s32.totalorder %s197, %s199
    %p206 = scmp.eq.s32.totalorder %s21, 1
    %p207 = por %p205, %p206
    %p208 = scmp.ne.s32.totalorder %s199, %s200
    %p209 = scmp.eq.s32.totalorder %s21, 0
    %p210 = por %p208, %p209
    %p211 = scmp.ne.s32.totalorder %s199, %s200
    %p212 = scmp.eq.s32.totalorder %s22, 1
    %p213 = por %p211, %p212
    %p215 = scmp.ne.s32.totalorder %s200, %s214
    %p216 = scmp.eq.s32.totalorder %s22, 0
    %p217 = por %p215, %p216
    %s219 = sadd.s32 %s218, 1
    %p222 = scmp.eq.s32.totalorder %s16, 1
    %p223 = scmp.ne.s32.totalorder %s218, %s220
    %p224 = scmp.eq.s32.totalorder %s16, 0
    %p225 = por %p223, %p224
    %p226 = scmp.ne.s32.totalorder %s218, %s220
    %p227 = scmp.eq.s32.totalorder %s21, 1
    %p228 = por %p226, %p227
    %p229 = scmp.ne.s32.totalorder %s220, %s221
    %p230 = scmp.eq.s32.totalorder %s21, 0
    %p231 = por %p229, %p230
    %p232 = scmp.ne.s32.totalorder %s220, %s221
    %p233 = scmp.eq.s32.totalorder %s22, 1
    %p234 = por %p232, %p233
    %p236 = scmp.ne.s32.totalorder %s221, %s235
    %p237 = scmp.eq.s32.totalorder %s22, 0
    %p238 = por %p236, %p237
    %s239 = ssub.s32 %s16, %s23
    %p240 = scmp.eq.s32.totalorder %s239, 0
    %s242 = sadd.s32 %s241, 1
    %s243 = scalar_select %p240, %s241, %s242
    %p246 = pneg %p240
    %p247 = scmp.eq.s32.totalorder %s16, 1
    %p248 = por %p246, %p247
    %p249 = scmp.ne.s32.totalorder %s241, %s244
    %p250 = scmp.eq.s32.totalorder %s16, 0
    %p251 = por %p249, %p250
    %p252 = scmp.ne.s32.totalorder %s241, %s244
    %p253 = scmp.eq.s32.totalorder %s21, 1
    %p254 = por %p252, %p253
    %p255 = scmp.ne.s32.totalorder %s244, %s245
    %p256 = scmp.eq.s32.totalorder %s21, 0
    %p257 = por %p255, %p256
    %p258 = scmp.ne.s32.totalorder %s244, %s245
    %p259 = scmp.eq.s32.totalorder %s22, 1
    %p260 = por %p258, %p259
    %p262 = scmp.ne.s32.totalorder %s245, %s261
    %p263 = scmp.eq.s32.totalorder %s22, 0
    %p264 = por %p262, %p263
    %p265 = scmp.le.s32.totalorder 1, %s16
    %p266 = scmp.lt.s32.totalorder %s16, 3
    %p267 = pnand %p265, %p266
    %p268 = pneg %p267
    // Predicated region
    $region9: #{net_forward.5} parent=5 // pred_check
      _
    $region10: #{net_forward.5} parent=5 // pred_check_branch
      %270 = sbr.rel (%p267) target = $region12
    $region11: #{net_forward.5} parent=5 // pred_region
      %s271 = ssub.s32 %s16, 1
      // Predicated region
      $region13: #{net_forward.5} parent=11 // pred_check
        %p272 = pneg %p63
      $region14: #{net_forward.5} parent=11 // pred_check_branch
        %274 = sbr.rel (%p272) target = $region16
      $region15: #{net_forward.5} parent=11 // pred_region
        _
      $region16: #{net_forward.5} parent=11 // pred_fallthru
        _
      // Predicated region
      $region17: #{net_forward.5} parent=11 // pred_check
        %p275 = pneg %p84
      $region18: #{net_forward.5} parent=11 // pred_check_branch
        %277 = sbr.rel (%p275) target = $region20
      $region19: #{net_forward.5} parent=11 // pred_region
        _
      $region20: #{net_forward.5} parent=11 // pred_fallthru
        _
      // Predicated region
      $region21: #{net_forward.5} parent=11 // pred_check
        %p278 = pneg %p105
      $region22: #{net_forward.5} parent=11 // pred_check_branch
        %280 = sbr.rel (%p278) target = $region24
      $region23: #{net_forward.5} parent=11 // pred_region
        _
      $region24: #{net_forward.5} parent=11 // pred_fallthru
        _
      // Predicated region
      $region25: #{net_forward.5} parent=11 // pred_check
        %p281 = pneg %p126
      $region26: #{net_forward.5} parent=11 // pred_check_branch
        %283 = sbr.rel (%p281) target = $region28
      $region27: #{net_forward.5} parent=11 // pred_region
        _
      $region28: #{net_forward.5} parent=11 // pred_fallthru
        _
      // Predicated region
      $region29: #{net_forward.5} parent=11 // pred_check
        %p284 = pneg %p147
      $region30: #{net_forward.5} parent=11 // pred_check_branch
        %286 = sbr.rel (%p284) target = $region32
      $region31: #{net_forward.5} parent=11 // pred_region
        _
      $region32: #{net_forward.5} parent=11 // pred_fallthru
        _
      // Predicated region
      $region33: #{net_forward.5} parent=11 // pred_check
        %p287 = pneg %p168
      $region34: #{net_forward.5} parent=11 // pred_check_branch
        %289 = sbr.rel (%p287) target = $region36
      $region35: #{net_forward.5} parent=11 // pred_region
        _
      $region36: #{net_forward.5} parent=11 // pred_fallthru
        _
      // Predicated region
      $region37: #{net_forward.5} parent=11 // pred_check
        %p290 = pneg %p189
      $region38: #{net_forward.5} parent=11 // pred_check_branch
        %292 = sbr.rel (%p290) target = $region40
      $region39: #{net_forward.5} parent=11 // pred_region
        _
      $region40: #{net_forward.5} parent=11 // pred_fallthru
        _
      // Predicated region
      $region41: #{net_forward.5} parent=11 // pred_check
        %p293 = pneg %p210
      $region42: #{net_forward.5} parent=11 // pred_check_branch
        %295 = sbr.rel (%p293) target = $region44
      $region43: #{net_forward.5} parent=11 // pred_region
        _
      $region44: #{net_forward.5} parent=11 // pred_fallthru
        _
      // Predicated region
      $region45: #{net_forward.5} parent=11 // pred_check
        %p296 = pneg %p231
      $region46: #{net_forward.5} parent=11 // pred_check_branch
        %298 = sbr.rel (%p296) target = $region48
      $region47: #{net_forward.5} parent=11 // pred_region
        _
      $region48: #{net_forward.5} parent=11 // pred_fallthru
        _
    $region12: #{net_forward.5} parent=5 // pred_fallthru
      _
    %p299 = scmp.lt.s32.totalorder %s16, 2
    // Predicated region
    $region49: #{net_forward.5} parent=5 // pred_check
      %p300 = pneg %p299
    $region50: #{net_forward.5} parent=5 // pred_check_branch
      %302 = sbr.rel (%p300) target = $region52
    $region51: #{net_forward.5} parent=5 // pred_region
      // Predicated region
      $region53: #{net_forward.5} parent=51 // pred_check
        %p303 = pneg %p36
      $region54: #{net_forward.5} parent=51 // pred_check_branch
        %305 = sbr.rel (%p303) target = $region56
      $region55: #{net_forward.5} parent=51 // pred_region
        %p306 = scmp.lt.s32.totalorder %s16, 1
        %s307 = scalar_select %p306, %s16, 1
        %s308 = smul.addr %s307, 8
        %s309 = scalar_lea.vmem %s0, %s308
      $region56: #{net_forward.5} parent=51 // pred_fallthru
        _
    $region52: #{net_forward.5} parent=5 // pred_fallthru
      _
    %p310 = scmp.le.s32.totalorder 1, %s16
    %p311 = scmp.lt.s32.totalorder %s16, 3
    %p312 = pnand %p310, %p311
    %p313 = pneg %p312
    // Predicated region
    $region57: #{net_forward.5} parent=5 // pred_check
      _
    $region58: #{net_forward.5} parent=5 // pred_check_branch
      %315 = sbr.rel (%p312) target = $region60
    $region59: #{net_forward.5} parent=5 // pred_region
      %s316 = ssub.s32 %s16, 1
      %p317 = scmp.lt.s32.totalorder %s21, 1
      %s318 = scalar_select %p317, %s21, 1
      %s319 = smul.addr %s318, 8
      %s320 = scalar_lea.vmem %s0, %s319
      %p321 = pneg %p42
      %p322 = pneg %p39
      %p323 = pneg %p63
      %p324 = pneg %p60
      %p325 = pneg %p84
      %p326 = pneg %p81
      %p327 = pneg %p105
      %p328 = pneg %p102
      %p329 = pneg %p126
      %p330 = pneg %p123
      %p331 = pneg %p147
      %p332 = pneg %p144
      %p333 = pneg %p168
      %p334 = pneg %p165
      %p335 = pneg %p189
      %p336 = pneg %p186
      %p337 = pneg %p210
      %p338 = pneg %p207
      %p339 = pneg %p231
      %p340 = pneg %p228
      %p341 = pneg %p257
      %p342 = pneg %p254
      %p343 = scmp.lt.s32.totalorder %s21, 1
      %s344 = scalar_select %p343, %s21, 1
      %s345 = smul.addr %s344, 8
      %s346 = scalar_lea.vmem %s10, %s345
      %p347 = scmp.lt.s32.totalorder %s21, 1
      %s348 = scalar_select %p347, %s21, 1
      %s349 = smul.addr %s348, 8
      %s350 = scalar_lea.vmem %s0, %s349
      %p351 = scmp.lt.s32.totalorder %s21, 1
      %s352 = scalar_select %p351, %s21, 1
      %s353 = smul.addr %s352, 8
      %s354 = scalar_lea.vmem %s10, %s353
      %v355 = vld [vmem:[%s350] sm:$0xff]
      %v356 = vmul.f32 %v355, %v355
      %vm357 = vcmask 261120
      %v358 = vsel %vm357, %v356, 0.0
      %359 = vadd.xlane.f32.xlu0 %v358
      %v360 = vpop.xlane.xlu0 %359
      %v361 = vrcp.pop 32.0
      %v362 = vmul.f32 %v360, %v361
      %v363 = vadd.f32 %v362, 1e-05
      %v364 = vrsqrt.pop %v363
      %v365 = vmul.f32 %v355, %v364
      %v366 = vld [vmem:[%s1] sm:$0x1]
      %v368 = vlaneseq
      %v369 = vshrl.u32 %v368, 7
      %v370 = vsub.s32 0, %v369
      %v371 = vrot.slane %v366, %v370
      %v373 = vmul.f32 %v365, %v371
      %v374 = vld [vmem:[%s2] sm:$0xff]
      %v375 = vld [vmem:[%s2 + $0x8] sm:$0xff]
      %v376 = vld [vmem:[%s2 + $0x10] sm:$0xff]
      %v377 = vld [vmem:[%s2 + $0x18] sm:$0xff]
      %v379 = vsel %vm357, %v373, 0
      %381 = vmatprep.subr.mxu0 0.0
      %382 = vmatpush1.msra.mxu0 %v374
      %383 = vmatprep.subr.mxu0 0.0
      %384 = vmatpush1.msra.mxu0 %v375
      %385 = vmatprep.subr.mxu0 0.0
      %386 = vmatpush1.msra.mxu0 %v376
      %387 = vmatprep.subr.mxu0 0.0
      %388 = vmatpush1.msra.mxu0 %v377
      %389 = vmatprep.subr.mxu0 0.0
      %390 = vmatpush1.msra.mxu0 0.0
      %391 = vmatprep.subr.mxu0 0.0
      %392 = vmatpush1.msra.mxu0 0.0
      %393 = vmatprep.subr.mxu0 0.0
      %394 = vmatpush1.msra.mxu0 0.0
      %395 = vmatprep.subr.mxu0 0.0
      %396 = vmatpush1.msra.mxu0 0.0
      %397 = vmatprep.subr.mxu0 0.0
      %398 = vmatpush1.msra.mxu0 0.0
      %399 = vmatprep.subr.mxu0 0.0
      %400 = vmatpush1.msra.mxu0 0.0
      %401 = vmatprep.subr.mxu0 0.0
      %402 = vmatpush1.msra.mxu0 0.0
      %403 = vmatprep.subr.mxu0 0.0
      %404 = vmatpush1.msra.mxu0 0.0
      %405 = vmatprep.subr.mxu0 0.0
      %406 = vmatpush1.msra.mxu0 0.0
      %407 = vmatprep.subr.mxu0 0.0
      %408 = vmatpush1.msra.mxu0 0.0
      %409 = vmatprep.subr.mxu0 0.0
      %410 = vmatpush1.msra.mxu0 0.0
      %411 = vmatprep.subr.mxu0 0.0
      %412 = vmatpush1.msra.mxu0 0.0
      %413 = vmatprep.subr.mxu0 0.0
      %414 = vmatpush1.msra.mxu0 0.0
      %415 = vmatprep.subr.mxu0 0.0
      %416 = vmatpush1.msra.mxu0 0.0
      %417 = vmatprep.subr.mxu0 0.0
      %418 = vmatpush1.msra.mxu0 0.0
      %419 = vmatprep.subr.mxu0 0.0
      %420 = vmatpush1.msra.mxu0 0.0
      %421 = vmatprep.subr.mxu0 0.0
      %422 = vmatpush1.msra.mxu0 0.0
      %423 = vmatprep.subr.mxu0 0.0
      %424 = vmatpush1.msra.mxu0 0.0
      %425 = vmatprep.subr.mxu0 0.0
      %426 = vmatpush1.msra.mxu0 0.0
      %427 = vmatprep.subr.mxu0 0.0
      %428 = vmatpush1.msra.mxu0 0.0
      %429 = vmatprep.subr.mxu0 0.0
      %430 = vmatpush1.msra.mxu0 0.0
      %431 = vmatprep.subr.mxu0 0.0
      %432 = vmatpush1.msra.mxu0 0.0
      %433 = vmatprep.subr.mxu0 0.0
      %434 = vmatpush1.msra.mxu0 0.0
      %435 = vmatprep.subr.mxu0 0.0
      %436 = vmatpush1.msra.mxu0 0.0
      %437 = vmatprep.subr.mxu0 0.0
      %438 = vmatpush1.msra.mxu0 0.0
      %439 = vmatprep.subr.mxu0 0.0
      %440 = vmatpush1.msra.mxu0 0.0
      %441 = vmatprep.subr.mxu0 0.0
      %442 = vmatpush1.msra.mxu0 0.0
      %443 = vmatprep.subr.mxu0 0.0
      %444 = vmatpush1.msra.mxu0 0.0
      %445 = vmatprep.mubr.f32.mxu0 0.0
      %446 = vmatmul.mubr.f32.gmra.mrb[0].mxu0 %v379
      %v447 = vpop.f32.mrb[0].mxu0
      %v448 = vadd.f32 0.0, %v447
      %v449 = vpop.f32.mrb[0].mxu0
      %450 = vdwg.mxu0
      %vm451 = vcmask 518144
      %452 = vst.msk [vmem:[#allocation2] sm:$0x7] %vm451, 0.0
      %vm453 = vcmask 523264
      %454 = vst.msk [vmem:[#allocation2 + $0x3] sm:$0xff] %vm453, %v448
      %v455 = vld [vmem:[#allocation2] sm:$0xff]
      %v456 = vld [vmem:[#allocation2 + $0x8] sm:$0x7]
      %v457 = vld [vmem:[%s4] sm:$0x1]
      %v458 = vld [vmem:[%s3] sm:$0x1]
      %v459 = vlaneseq
      %v460 = vshrl.u32 %v459, 7
      %v461 = vsub.s32 0, %v460
      %v462 = vrot.slane %v458, %v461
      %v463 = vmul.f32 %v455, %v462
      %v465 = vlaneseq
      %v466 = vshrl.u32 %v465, 7
      %v467 = vsub.s32 0, %v466
      %v468 = vrot.slane %v457, %v467
      %v470 = vadd.f32 %v468, %v463
      %v471 = vld [vmem:[%s3 + $0x1] sm:$0x1]
      %v472 = vlaneseq
      %v473 = vshrl.u32 %v472, 7
      %v474 = vsub.s32 0, %v473
      %v475 = vrot.slane %v471, %v474
      %v476 = vmul.f32 %v455, %v475
      %v477 = vmul.f32 %v456, %v475
      %vm480 = vcmask 1046528
      %v481 = vrot.slane %v476, 1
      %v482 = vrot.slane %v477, 1
      %v483 = vsel %vm480, %v481, %v482
      %v485 = vadd.f32 %v470, %v483
      %v486 = vld [vmem:[%s3 + $0x2] sm:$0x1]
      %v487 = vlaneseq
      %v488 = vshrl.u32 %v487, 7
      %v489 = vsub.s32 0, %v488
      %v490 = vrot.slane %v486, %v489
      %v491 = vmul.f32 %v455, %v490
      %v492 = vmul.f32 %v456, %v490
      %vm495 = vcmask 1045504
      %v496 = vrot.slane %v491, 2
      %v497 = vrot.slane %v492, 2
      %v498 = vsel %vm495, %v496, %v497
      %v500 = vadd.f32 %v485, %v498
      %v501 = vld [vmem:[%s3 + $0x3] sm:$0x1]
      %v502 = vlaneseq
      %v503 = vshrl.u32 %v502, 7
      %v504 = vsub.s32 0, %v503
      %v505 = vrot.slane %v501, %v504
      %v506 = vmul.f32 %v455, %v505
      %v507 = vmul.f32 %v456, %v505
      %vm510 = vcmask 1044480
      %v511 = vrot.slane %v506, 3
      %v512 = vrot.slane %v507, 3
      %v513 = vsel %vm510, %v511, %v512
      %v515 = vadd.f32 %v500, %v513
      %v516 = vsub.f32 0.0, %v515
      %v517 = vmul.f32 %v516, 1.442695
      %v518 = vpow.pop %v517
      %v519 = vadd.f32 %v518, 1.0
      %v520 = vrcp.pop %v519
      %v521 = vmul.f32 %v515, %v520
      %v522 = vld [vmem:[%s5] sm:$0xff]
      %v523 = vld [vmem:[%s5 + $0x8] sm:$0xff]
      %v524 = vld [vmem:[%s5 + $0x10] sm:$0xff]
      %v525 = vld [vmem:[%s5 + $0x18] sm:$0xff]
      %v526 = vld [vmem:[%s5 + $0x20] sm:$0xff]
      %v527 = vld [vmem:[%s5 + $0x28] sm:$0xff]
      %v528 = vld [vmem:[%s5 + $0x30] sm:$0xff]
      %v529 = vld [vmem:[%s5 + $0x38] sm:$0xff]
      %v530 = vld [vmem:[%s6] sm:$0x1]
      %v532 = vlaneseq
      %v533 = vshrl.u32 %v532, 7
      %v534 = vsub.s32 0, %v533
      %v535 = vrot.slane %v530, %v534
      %v538 = vsel %vm453, %v521, 0
      %540 = vmatprep.subr.mxu0 0.0
      %541 = vmatpush1.msra.mxu0 %v522
      %542 = vmatprep.subr.mxu0 0.0
      %543 = vmatpush1.msra.mxu0 %v523
      %544 = vmatprep.subr.mxu0 0.0
      %545 = vmatpush1.msra.mxu0 %v524
      %546 = vmatprep.subr.mxu0 0.0
      %547 = vmatpush1.msra.mxu0 %v525
      %548 = vmatprep.subr.mxu0 0.0
      %549 = vmatpush1.msra.mxu0 %v526
      %550 = vmatprep.subr.mxu0 0.0
      %551 = vmatpush1.msra.mxu0 %v527
      %552 = vmatprep.subr.mxu0 0.0
      %553 = vmatpush1.msra.mxu0 %v528
      %554 = vmatprep.subr.mxu0 0.0
      %555 = vmatpush1.msra.mxu0 %v529
      %556 = vmatprep.subr.mxu0 0.0
      %557 = vmatpush1.msra.mxu0 0.0
      %558 = vmatprep.subr.mxu0 0.0
      %559 = vmatpush1.msra.mxu0 0.0
      %560 = vmatprep.subr.mxu0 0.0
      %561 = vmatpush1.msra.mxu0 0.0
      %562 = vmatprep.subr.mxu0 0.0
      %563 = vmatpush1.msra.mxu0 0.0
      %564 = vmatprep.subr.mxu0 0.0
      %565 = vmatpush1.msra.mxu0 0.0
      %566 = vmatprep.subr.mxu0 0.0
      %567 = vmatpush1.msra.mxu0 0.0
      %568 = vmatprep.subr.mxu0 0.0
      %569 = vmatpush1.msra.mxu0 0.0
      %570 = vmatprep.subr.mxu0 0.0
      %571 = vmatpush1.msra.mxu0 0.0
      %572 = vmatprep.subr.mxu0 0.0
      %573 = vmatpush1.msra.mxu0 0.0
      %574 = vmatprep.subr.mxu0 0.0
      %575 = vmatpush1.msra.mxu0 0.0
      %576 = vmatprep.subr.mxu0 0.0
      %577 = vmatpush1.msra.mxu0 0.0
      %578 = vmatprep.subr.mxu0 0.0
      %579 = vmatpush1.msra.mxu0 0.0
      %580 = vmatprep.subr.mxu0 0.0
      %581 = vmatpush1.msra.mxu0 0.0
      %582 = vmatprep.subr.mxu0 0.0
      %583 = vmatpush1.msra.mxu0 0.0
      %584 = vmatprep.subr.mxu0 0.0
      %585 = vmatpush1.msra.mxu0 0.0
      %586 = vmatprep.subr.mxu0 0.0
      %587 = vmatpush1.msra.mxu0 0.0
      %588 = vmatprep.subr.mxu0 0.0
      %589 = vmatpush1.msra.mxu0 0.0
      %590 = vmatprep.subr.mxu0 0.0
      %591 = vmatpush1.msra.mxu0 0.0
      %592 = vmatprep.subr.mxu0 0.0
      %593 = vmatpush1.msra.mxu0 0.0
      %594 = vmatprep.subr.mxu0 0.0
      %595 = vmatpush1.msra.mxu0 0.0
      %596 = vmatprep.subr.mxu0 0.0
      %597 = vmatpush1.msra.mxu0 0.0
      %598 = vmatprep.subr.mxu0 0.0
      %599 = vmatpush1.msra.mxu0 0.0
      %600 = vmatprep.subr.mxu0 0.0
      %601 = vmatpush1.msra.mxu0 0.0
      %602 = vmatprep.subr.mxu0 0.0
      %603 = vmatpush1.msra.mxu0 0.0
      %604 = vmatprep.mubr.f32.mxu0 0.0
      %605 = vmatmul.mubr.f32.gmra.mrb[0].mxu0 %v538
      %v606 = vpop.f32.mrb[0].mxu0
      %v607 = vadd.f32 %v535, %v606
      %v608 = vpop.f32.mrb[0].mxu0
      %609 = vdwg.mxu0
      %v610 = vmax.f32 %v607, 0.0
      %v611 = vand.u32 2147483647, %v607
      %v612 = vsub.f32 0.0, %v611
      %v613 = vmul.f32 %v612, 1.442695
      %v614 = vpow.pop %v613
      %v615 = vadd.f32 %v614, 1.0
      %v616 = vlog2.pop %v615
      %v617 = vmul.f32 %v616, 0.6931472
      %v618 = vadd.f32 %v610, %v617
      %619 = vst.msk [vmem:[#allocation3] sm:$0xff] %vm453, %v521
      %620 = vst.msk [vmem:[#allocation4] sm:$0xff] %vm453, %v618
      %622 = vrot.lane.b32.xlu0 %v607, 64
      %v623 = vpop.permute.xlu0 %622
      %vm625 = vcmask 130048
      %626 = vst.msk [vmem:[#allocation5] sm:$0xff] %vm625, %v623
      %627 = vrot.lane.b32.xlu0 %v607, 48
      %v628 = vpop.permute.xlu0 %627
      %630 = vst.msk [vmem:[#allocation6] sm:$0xff] %vm625, %v628
      %v631 = vld [vmem:[%s7] sm:$0xff]
      %v632 = vld [vmem:[%s7 + $0x8] sm:$0xff]
      %v633 = vmul.f32 %v631, 1.442695
      %v634 = vpow.pop %v633
      %v635 = vmul.f32 %v632, 1.442695
      %v636 = vpow.pop %v635
      %v637 = vsub.f32 0.0, %v634
      %v638 = vsub.f32 0.0, %v636
      %v639 = vld [vmem:[%s8] sm:$0x1]
      %v640 = vld [vmem:[#allocation4] sm:$0x1]
      %v641 = vld [vmem:[#allocation3] sm:$0x1]
      %v642 = vld [vmem:[#allocation5] sm:$0x1]
      %v643 = vld [vmem:[#allocation6] sm:$0x1]
      %v644 = vlaneseq
      %v645 = vshrl.u32 %v644, 7
      %v646 = vsub.s32 0, %v645
      %v647 = vrot.slane %v640, %v646
      %v648 = vmul.f32 %v647, %v637
      %v649 = vmul.f32 %v647, %v638
      %v650 = vmul.f32 %v648, 1.442695
      %v651 = vpow.pop %v650
      %v652 = vmul.f32 %v649, 1.442695
      %v653 = vpow.pop %v652
      %v654 = vlaneseq
      %v655 = vshrl.u32 %v654, 7
      %v656 = vsub.s32 0, %v655
      %v657 = vrot.slane %v642, %v656
      %659 = vbcast.lane.b32.xlu0 %v657, 256
      %v660 = vpop.permute.xlu0 %659
      %s662 = sor.u32 256, 8
      %663 = vbcast.lane.b32.xlu0 %v657, %s662
      %v664 = vpop.permute.xlu0 %663
      %v665 = vmul.f32 %v640, %v641
      %v666 = vlaneseq
      %v667 = vshrl.u32 %v666, 7
      %v668 = vsub.s32 0, %v667
      %v669 = vrot.slane %v665, %v668
      %v670 = vmul.f32 %v660, %v669
      %v671 = vmul.f32 %v664, %v669
      %v672 = vmul.f32 %v651, 0.0
      %v673 = vmul.f32 %v653, 0.0
      %v674 = vadd.f32 %v672, %v670
      %v675 = vadd.f32 %v673, %v671
      %v676 = vmul.f32 %v639, %v641
      %v678 = vsel %vm625, %v643, 0
      %680 = vmatprep.subr.mxu0 0.0
      %681 = vmatpush1.msra.mxu0 %v674
      %682 = vmatprep.subr.mxu0 0.0
      %683 = vmatpush1.msra.mxu0 %v675
      %684 = vmatprep.subr.mxu0 0.0
      %685 = vmatpush1.msra.mxu0 0.0
      %686 = vmatprep.subr.mxu0 0.0
      %687 = vmatpush1.msra.mxu0 0.0
      %688 = vmatprep.subr.mxu0 0.0
      %689 = vmatpush1.msra.mxu0 0.0
      %690 = vmatprep.subr.mxu0 0.0
      %691 = vmatpush1.msra.mxu0 0.0
      %692 = vmatprep.subr.mxu0 0.0
      %693 = vmatpush1.msra.mxu0 0.0
      %694 = vmatprep.subr.mxu0 0.0
      %695 = vmatpush1.msra.mxu0 0.0
      %696 = vmatprep.subr.mxu0 0.0
      %697 = vmatpush1.msra.mxu0 0.0
      %698 = vmatprep.subr.mxu0 0.0
      %699 = vmatpush1.msra.mxu0 0.0
      %700 = vmatprep.subr.mxu0 0.0
      %701 = vmatpush1.msra.mxu0 0.0
      %702 = vmatprep.subr.mxu0 0.0
      %703 = vmatpush1.msra.mxu0 0.0
      %704 = vmatprep.subr.mxu0 0.0
      %705 = vmatpush1.msra.mxu0 0.0
      %706 = vmatprep.subr.mxu0 0.0
      %707 = vmatpush1.msra.mxu0 0.0
      %708 = vmatprep.subr.mxu0 0.0
      %709 = vmatpush1.msra.mxu0 0.0
      %710 = vmatprep.subr.mxu0 0.0
      %711 = vmatpush1.msra.mxu0 0.0
      %712 = vmatprep.subr.mxu0 0.0
      %713 = vmatpush1.msra.mxu0 0.0
      %714 = vmatprep.subr.mxu0 0.0
      %715 = vmatpush1.msra.mxu0 0.0
      %716 = vmatprep.subr.mxu0 0.0
      %717 = vmatpush1.msra.mxu0 0.0
      %718 = vmatprep.subr.mxu0 0.0
      %719 = vmatpush1.msra.mxu0 0.0
      %720 = vmatprep.subr.mxu0 0.0
      %721 = vmatpush1.msra.mxu0 0.0
      %722 = vmatprep.subr.mxu0 0.0
      %723 = vmatpush1.msra.mxu0 0.0
      %724 = vmatprep.subr.mxu0 0.0
      %725 = vmatpush1.msra.mxu0 0.0
      %726 = vmatprep.subr.mxu0 0.0
      %727 = vmatpush1.msra.mxu0 0.0
      %728 = vmatprep.subr.mxu0 0.0
      %729 = vmatpush1.msra.mxu0 0.0
      %730 = vmatprep.subr.mxu0 0.0
      %731 = vmatpush1.msra.mxu0 0.0
      %732 = vmatprep.subr.mxu0 0.0
      %733 = vmatpush1.msra.mxu0 0.0
      %734 = vmatprep.subr.mxu0 0.0
      %735 = vmatpush1.msra.mxu0 0.0
      %736 = vmatprep.subr.mxu0 0.0
      %737 = vmatpush1.msra.mxu0 0.0
      %738 = vmatprep.subr.mxu0 0.0
      %739 = vmatpush1.msra.mxu0 0.0
      %740 = vmatprep.subr.mxu0 0.0
      %741 = vmatpush1.msra.mxu0 0.0
      %742 = vmatprep.subr.mxu0 0.0
      %743 = vmatpush1.msra.mxu0 0.0
      %744 = vmatprep.mubr.f32.mxu0 0.0
      %745 = vmatmul.mubr.f32.gmra.mrb[0].mxu0 %v678
      %v746 = vpop.f32.mrb[0].mxu0
      %v747 = vadd.f32 %v676, %v746
      %v748 = vpop.f32.mrb[0].mxu0
      %749 = vdwg.mxu0
      %vm750 = vcmask 516096
      %751 = vst.msk [vmem:[#allocation7] sm:$0x1] %vm750, %v747
      %v752 = vld [vmem:[#allocation4 + $0x1] sm:$0x1]
      %v753 = vld [vmem:[#allocation3 + $0x1] sm:$0x1]
      %v754 = vld [vmem:[#allocation5 + $0x1] sm:$0x1]
      %v755 = vld [vmem:[#allocation6 + $0x1] sm:$0x1]
      %v756 = vlaneseq
      %v757 = vshrl.u32 %v756, 7
      %v758 = vsub.s32 0, %v757
      %v759 = vrot.slane %v752, %v758
      %v760 = vmul.f32 %v759, %v637
      %v761 = vmul.f32 %v759, %v638
      %v762 = vmul.f32 %v760, 1.442695
      %v763 = vpow.pop %v762
      %v764 = vmul.f32 %v761, 1.442695
      %v765 = vpow.pop %v764
      %v766 = vlaneseq
      %v767 = vshrl.u32 %v766, 7
      %v768 = vsub.s32 0, %v767
      %v769 = vrot.slane %v754, %v768
      %771 = vbcast.lane.b32.xlu0 %v769, 256
      %v772 = vpop.permute.xlu0 %771
      %s774 = sor.u32 256, 8
      %775 = vbcast.lane.b32.xlu0 %v769, %s774
      %v776 = vpop.permute.xlu0 %775
      %v777 = vmul.f32 %v752, %v753
      %v778 = vlaneseq
      %v779 = vshrl.u32 %v778, 7
      %v780 = vsub.s32 0, %v779
      %v781 = vrot.slane %v777, %v780
      %v782 = vmul.f32 %v772, %v781
      %v783 = vmul.f32 %v776, %v781
      %v784 = vmul.f32 %v763, %v674
      %v785 = vmul.f32 %v765, %v675
      %v786 = vadd.f32 %v784, %v782
      %v787 = vadd.f32 %v785, %v783
      %v788 = vmul.f32 %v639, %v753
      %v790 = vsel %vm625, %v755, 0
      %792 = vmatprep.subr.mxu0 0.0
      %793 = vmatpush1.msra.mxu0 %v786
      %794 = vmatprep.subr.mxu0 0.0
      %795 = vmatpush1.msra.mxu0 %v787
      %796 = vmatprep.subr.mxu0 0.0
      %797 = vmatpush1.msra.mxu0 0.0
      %798 = vmatprep.subr.mxu0 0.0
      %799 = vmatpush1.msra.mxu0 0.0
      %800 = vmatprep.subr.mxu0 0.0
      %801 = vmatpush1.msra.mxu0 0.0
      %802 = vmatprep.subr.mxu0 0.0
      %803 = vmatpush1.msra.mxu0 0.0
      %804 = vmatprep.subr.mxu0 0.0
      %805 = vmatpush1.msra.mxu0 0.0
      %806 = vmatprep.subr.mxu0 0.0
      %807 = vmatpush1.msra.mxu0 0.0
      %808 = vmatprep.subr.mxu0 0.0
      %809 = vmatpush1.msra.mxu0 0.0
      %810 = vmatprep.subr.mxu0 0.0
      %811 = vmatpush1.msra.mxu0 0.0
      %812 = vmatprep.subr.mxu0 0.0
      %813 = vmatpush1.msra.mxu0 0.0
      %814 = vmatprep.subr.mxu0 0.0
      %815 = vmatpush1.msra.mxu0 0.0
      %816 = vmatprep.subr.mxu0 0.0
      %817 = vmatpush1.msra.mxu0 0.0
      %818 = vmatprep.subr.mxu0 0.0
      %819 = vmatpush1.msra.mxu0 0.0
      %820 = vmatprep.subr.mxu0 0.0
      %821 = vmatpush1.msra.mxu0 0.0
      %822 = vmatprep.subr.mxu0 0.0
      %823 = vmatpush1.msra.mxu0 0.0
      %824 = vmatprep.subr.mxu0 0.0
      %825 = vmatpush1.msra.mxu0 0.0
      %826 = vmatprep.subr.mxu0 0.0
      %827 = vmatpush1.msra.mxu0 0.0
      %828 = vmatprep.subr.mxu0 0.0
      %829 = vmatpush1.msra.mxu0 0.0
      %830 = vmatprep.subr.mxu0 0.0
      %831 = vmatpush1.msra.mxu0 0.0
      %832 = vmatprep.subr.mxu0 0.0
      %833 = vmatpush1.msra.mxu0 0.0
      %834 = vmatprep.subr.mxu0 0.0
      %835 = vmatpush1.msra.mxu0 0.0
      %836 = vmatprep.subr.mxu0 0.0
      %837 = vmatpush1.msra.mxu0 0.0
      %838 = vmatprep.subr.mxu0 0.0
      %839 = vmatpush1.msra.mxu0 0.0
      %840 = vmatprep.subr.mxu0 0.0
      %841 = vmatpush1.msra.mxu0 0.0
      %842 = vmatprep.subr.mxu0 0.0
      %843 = vmatpush1.msra.mxu0 0.0
      %844 = vmatprep.subr.mxu0 0.0
      %845 = vmatpush1.msra.mxu0 0.0
      %846 = vmatprep.subr.mxu0 0.0
      %847 = vmatpush1.msra.mxu0 0.0
      %848 = vmatprep.subr.mxu0 0.0
      %849 = vmatpush1.msra.mxu0 0.0
      %850 = vmatprep.subr.mxu0 0.0
      %851 = vmatpush1.msra.mxu0 0.0
      %852 = vmatprep.subr.mxu0 0.0
      %853 = vmatpush1.msra.mxu0 0.0
      %854 = vmatprep.subr.mxu0 0.0
      %855 = vmatpush1.msra.mxu0 0.0
      %856 = vmatprep.mubr.f32.mxu0 0.0
      %857 = vmatmul.mubr.f32.gmra.mrb[0].mxu0 %v790
      %v858 = vpop.f32.mrb[0].mxu0
      %v859 = vadd.f32 %v788, %v858
      %v860 = vpop.f32.mrb[0].mxu0
      %861 = vdwg.mxu0
      %862 = vst.msk [vmem:[#allocation7 + $0x1] sm:$0x1] %vm750, %v859
      %v863 = vld [vmem:[#allocation4 + $0x2] sm:$0x1]
      %v864 = vld [vmem:[#allocation3 + $0x2] sm:$0x1]
      %v865 = vld [vmem:[#allocation5 + $0x2] sm:$0x1]
      %v866 = vld [vmem:[#allocation6 + $0x2] sm:$0x1]
      %v867 = vlaneseq
      %v868 = vshrl.u32 %v867, 7
      %v869 = vsub.s32 0, %v868
      %v870 = vrot.slane %v863, %v869
      %v871 = vmul.f32 %v870, %v637
      %v872 = vmul.f32 %v870, %v638
      %v873 = vmul.f32 %v871, 1.442695
      %v874 = vpow.pop %v873
      %v875 = vmul.f32 %v872, 1.442695
      %v876 = vpow.pop %v875
      %v877 = vlaneseq
      %v878 = vshrl.u32 %v877, 7
      %v879 = vsub.s32 0, %v878
      %v880 = vrot.slane %v865, %v879
      %882 = vbcast.lane.b32.xlu0 %v880, 256
      %v883 = vpop.permute.xlu0 %882
      %s885 = sor.u32 256, 8
      %886 = vbcast.lane.b32.xlu0 %v880, %s885
      %v887 = vpop.permute.xlu0 %886
      %v888 = vmul.f32 %v863, %v864
      %v889 = vlaneseq
      %v890 = vshrl.u32 %v889, 7
      %v891 = vsub.s32 0, %v890
      %v892 = vrot.slane %v888, %v891
      %v893 = vmul.f32 %v883, %v892
      %v894 = vmul.f32 %v887, %v892
      %v895 = vmul.f32 %v874, %v786
      %v896 = vmul.f32 %v876, %v787
      %v897 = vadd.f32 %v895, %v893
      %v898 = vadd.f32 %v896, %v894
      %v899 = vmul.f32 %v639, %v864
      %v901 = vsel %vm625, %v866, 0
      %903 = vmatprep.subr.mxu0 0.0
      %904 = vmatpush1.msra.mxu0 %v897
      %905 = vmatprep.subr.mxu0 0.0
      %906 = vmatpush1.msra.mxu0 %v898
      %907 = vmatprep.subr.mxu0 0.0
      %908 = vmatpush1.msra.mxu0 0.0
      %909 = vmatprep.subr.mxu0 0.0
      %910 = vmatpush1.msra.mxu0 0.0
      %911 = vmatprep.subr.mxu0 0.0
      %912 = vmatpush1.msra.mxu0 0.0
      %913 = vmatprep.subr.mxu0 0.0
      %914 = vmatpush1.msra.mxu0 0.0
      %915 = vmatprep.subr.mxu0 0.0
      %916 = vmatpush1.msra.mxu0 0.0
      %917 = vmatprep.subr.mxu0 0.0
      %918 = vmatpush1.msra.mxu0 0.0
      %919 = vmatprep.subr.mxu0 0.0
      %920 = vmatpush1.msra.mxu0 0.0
      %921 = vmatprep.subr.mxu0 0.0
      %922 = vmatpush1.msra.mxu0 0.0
      %923 = vmatprep.subr.mxu0 0.0
      %924 = vmatpush1.msra.mxu0 0.0
      %925 = vmatprep.subr.mxu0 0.0
      %926 = vmatpush1.msra.mxu0 0.0
      %927 = vmatprep.subr.mxu0 0.0
      %928 = vmatpush1.msra.mxu0 0.0
      %929 = vmatprep.subr.mxu0 0.0
      %930 = vmatpush1.msra.mxu0 0.0
      %931 = vmatprep.subr.mxu0 0.0
      %932 = vmatpush1.msra.mxu0 0.0
      %933 = vmatprep.subr.mxu0 0.0
      %934 = vmatpush1.msra.mxu0 0.0
      %935 = vmatprep.subr.mxu0 0.0
      %936 = vmatpush1.msra.mxu0 0.0
      %937 = vmatprep.subr.mxu0 0.0
      %938 = vmatpush1.msra.mxu0 0.0
      %939 = vmatprep.subr.mxu0 0.0
      %940 = vmatpush1.msra.mxu0 0.0
      %941 = vmatprep.subr.mxu0 0.0
      %942 = vmatpush1.msra.mxu0 0.0
      %943 = vmatprep.subr.mxu0 0.0
      %944 = vmatpush1.msra.mxu0 0.0
      %945 = vmatprep.subr.mxu0 0.0
      %946 = vmatpush1.msra.mxu0 0.0
      %947 = vmatprep.subr.mxu0 0.0
      %948 = vmatpush1.msra.mxu0 0.0
      %949 = vmatprep.subr.mxu0 0.0
      %950 = vmatpush1.msra.mxu0 0.0
      %951 = vmatprep.subr.mxu0 0.0
      %952 = vmatpush1.msra.mxu0 0.0
      %953 = vmatprep.subr.mxu0 0.0
      %954 = vmatpush1.msra.mxu0 0.0
      %955 = vmatprep.subr.mxu0 0.0
      %956 = vmatpush1.msra.mxu0 0.0
      %957 = vmatprep.subr.mxu0 0.0
      %958 = vmatpush1.msra.mxu0 0.0
      %959 = vmatprep.subr.mxu0 0.0
      %960 = vmatpush1.msra.mxu0 0.0
      %961 = vmatprep.subr.mxu0 0.0
      %962 = vmatpush1.msra.mxu0 0.0
      %963 = vmatprep.subr.mxu0 0.0
      %964 = vmatpush1.msra.mxu0 0.0
      %965 = vmatprep.subr.mxu0 0.0
      %966 = vmatpush1.msra.mxu0 0.0
      %967 = vmatprep.mubr.f32.mxu0 0.0
      %968 = vmatmul.mubr.f32.gmra.mrb[0].mxu0 %v901
      %v969 = vpop.f32.mrb[0].mxu0
      %v970 = vadd.f32 %v899, %v969
      %v971 = vpop.f32.mrb[0].mxu0
      %972 = vdwg.mxu0
      %973 = vst.msk [vmem:[#allocation7 + $0x2] sm:$0x1] %vm750, %v970
      %v974 = vld [vmem:[#allocation4 + $0x3] sm:$0x1]
      %v975 = vld [vmem:[#allocation3 + $0x3] sm:$0x1]
      %v976 = vld [vmem:[#allocation5 + $0x3] sm:$0x1]
      %v977 = vld [vmem:[#allocation6 + $0x3] sm:$0x1]
      %v978 = vlaneseq
      %v979 = vshrl.u32 %v978, 7
      %v980 = vsub.s32 0, %v979
      %v981 = vrot.slane %v974, %v980
      %v982 = vmul.f32 %v981, %v637
      %v983 = vmul.f32 %v981, %v638
      %v984 = vmul.f32 %v982, 1.442695
      %v985 = vpow.pop %v984
      %v986 = vmul.f32 %v983, 1.442695
      %v987 = vpow.pop %v986
      %v988 = vlaneseq
      %v989 = vshrl.u32 %v988, 7
      %v990 = vsub.s32 0, %v989
      %v991 = vrot.slane %v976, %v990
      %993 = vbcast.lane.b32.xlu0 %v991, 256
      %v994 = vpop.permute.xlu0 %993
      %s996 = sor.u32 256, 8
      %997 = vbcast.lane.b32.xlu0 %v991, %s996
      %v998 = vpop.permute.xlu0 %997
      %v999 = vmul.f32 %v974, %v975
      %v1000 = vlaneseq
      %v1001 = vshrl.u32 %v1000, 7
      %v1002 = vsub.s32 0, %v1001
      %v1003 = vrot.slane %v999, %v1002
      %v1004 = vmul.f32 %v994, %v1003
      %v1005 = vmul.f32 %v998, %v1003
      %v1006 = vmul.f32 %v985, %v897
      %v1007 = vmul.f32 %v987, %v898
      %v1008 = vadd.f32 %v1006, %v1004
      %v1009 = vadd.f32 %v1007, %v1005
      %v1010 = vmul.f32 %v639, %v975
      %v1012 = vsel %vm625, %v977, 0
      %1014 = vmatprep.subr.mxu0 0.0
      %1015 = vmatpush1.msra.mxu0 %v1008
      %1016 = vmatprep.subr.mxu0 0.0
      %1017 = vmatpush1.msra.mxu0 %v1009
      %1018 = vmatprep.subr.mxu0 0.0
      %1019 = vmatpush1.msra.mxu0 0.0
      %1020 = vmatprep.subr.mxu0 0.0
      %1021 = vmatpush1.msra.mxu0 0.0
      %1022 = vmatprep.subr.mxu0 0.0
      %1023 = vmatpush1.msra.mxu0 0.0
      %1024 = vmatprep.subr.mxu0 0.0
      %1025 = vmatpush1.msra.mxu0 0.0
      %1026 = vmatprep.subr.mxu0 0.0
      %1027 = vmatpush1.msra.mxu0 0.0
      %1028 = vmatprep.subr.mxu0 0.0
      %1029 = vmatpush1.msra.mxu0 0.0
      %1030 = vmatprep.subr.mxu0 0.0
      %1031 = vmatpush1.msra.mxu0 0.0
      %1032 = vmatprep.subr.mxu0 0.0
      %1033 = vmatpush1.msra.mxu0 0.0
      %1034 = vmatprep.subr.mxu0 0.0
      %1035 = vmatpush1.msra.mxu0 0.0
      %1036 = vmatprep.subr.mxu0 0.0
      %1037 = vmatpush1.msra.mxu0 0.0
      %1038 = vmatprep.subr.mxu0 0.0
      %1039 = vmatpush1.msra.mxu0 0.0
      %1040 = vmatprep.subr.mxu0 0.0
      %1041 = vmatpush1.msra.mxu0 0.0
      %1042 = vmatprep.subr.mxu0 0.0
      %1043 = vmatpush1.msra.mxu0 0.0
      %1044 = vmatprep.subr.mxu0 0.0
      %1045 = vmatpush1.msra.mxu0 0.0
      %1046 = vmatprep.subr.mxu0 0.0
      %1047 = vmatpush1.msra.mxu0 0.0
      %1048 = vmatprep.subr.mxu0 0.0
      %1049 = vmatpush1.msra.mxu0 0.0
      %1050 = vmatprep.subr.mxu0 0.0
      %1051 = vmatpush1.msra.mxu0 0.0
      %1052 = vmatprep.subr.mxu0 0.0
      %1053 = vmatpush1.msra.mxu0 0.0
      %1054 = vmatprep.subr.mxu0 0.0
      %1055 = vmatpush1.msra.mxu0 0.0
      %1056 = vmatprep.subr.mxu0 0.0
      %1057 = vmatpush1.msra.mxu0 0.0
      %1058 = vmatprep.subr.mxu0 0.0
      %1059 = vmatpush1.msra.mxu0 0.0
      %1060 = vmatprep.subr.mxu0 0.0
      %1061 = vmatpush1.msra.mxu0 0.0
      %1062 = vmatprep.subr.mxu0 0.0
      %1063 = vmatpush1.msra.mxu0 0.0
      %1064 = vmatprep.subr.mxu0 0.0
      %1065 = vmatpush1.msra.mxu0 0.0
      %1066 = vmatprep.subr.mxu0 0.0
      %1067 = vmatpush1.msra.mxu0 0.0
      %1068 = vmatprep.subr.mxu0 0.0
      %1069 = vmatpush1.msra.mxu0 0.0
      %1070 = vmatprep.subr.mxu0 0.0
      %1071 = vmatpush1.msra.mxu0 0.0
      %1072 = vmatprep.subr.mxu0 0.0
      %1073 = vmatpush1.msra.mxu0 0.0
      %1074 = vmatprep.subr.mxu0 0.0
      %1075 = vmatpush1.msra.mxu0 0.0
      %1076 = vmatprep.subr.mxu0 0.0
      %1077 = vmatpush1.msra.mxu0 0.0
      %1078 = vmatprep.mubr.f32.mxu0 0.0
      %1079 = vmatmul.mubr.f32.gmra.mrb[0].mxu0 %v1012
      %v1080 = vpop.f32.mrb[0].mxu0
      %v1081 = vadd.f32 %v1010, %v1080
      %v1082 = vpop.f32.mrb[0].mxu0
      %1083 = vdwg.mxu0
      %1084 = vst.msk [vmem:[#allocation7 + $0x3] sm:$0x1] %vm750, %v1081
      %v1085 = vld [vmem:[#allocation4 + $0x4] sm:$0x1]
      %v1086 = vld [vmem:[#allocation3 + $0x4] sm:$0x1]
      %v1087 = vld [vmem:[#allocation5 + $0x4] sm:$0x1]
      %v1088 = vld [vmem:[#allocation6 + $0x4] sm:$0x1]
      %v1089 = vlaneseq
      %v1090 = vshrl.u32 %v1089, 7
      %v1091 = vsub.s32 0, %v1090
      %v1092 = vrot.slane %v1085, %v1091
      %v1093 = vmul.f32 %v1092, %v637
      %v1094 = vmul.f32 %v1092, %v638
      %v1095 = vmul.f32 %v1093, 1.442695
      %v1096 = vpow.pop %v1095
      %v1097 = vmul.f32 %v1094, 1.442695
      %v1098 = vpow.pop %v1097
      %v1099 = vlaneseq
      %v1100 = vshrl.u32 %v1099, 7
      %v1101 = vsub.s32 0, %v1100
      %v1102 = vrot.slane %v1087, %v1101
      %1104 = vbcast.lane.b32.xlu0 %v1102, 256
      %v1105 = vpop.permute.xlu0 %1104
      %s1107 = sor.u32 256, 8
      %1108 = vbcast.lane.b32.xlu0 %v1102, %s1107
      %v1109 = vpop.permute.xlu0 %1108
      %v1110 = vmul.f32 %v1085, %v1086
      %v1111 = vlaneseq
      %v1112 = vshrl.u32 %v1111, 7
      %v1113 = vsub.s32 0, %v1112
      %v1114 = vrot.slane %v1110, %v1113
      %v1115 = vmul.f32 %v1105, %v1114
      %v1116 = vmul.f32 %v1109, %v1114
      %v1117 = vmul.f32 %v1096, %v1008
      %v1118 = vmul.f32 %v1098, %v1009
      %v1119 = vadd.f32 %v1117, %v1115
      %v1120 = vadd.f32 %v1118, %v1116
      %v1121 = vmul.f32 %v639, %v1086
      %v1123 = vsel %vm625, %v1088, 0
      %1125 = vmatprep.subr.mxu0 0.0
      %1126 = vmatpush1.msra.mxu0 %v1119
      %1127 = vmatprep.subr.mxu0 0.0
      %1128 = vmatpush1.msra.mxu0 %v1120
      %1129 = vmatprep.subr.mxu0 0.0
      %1130 = vmatpush1.msra.mxu0 0.0
      %1131 = vmatprep.subr.mxu0 0.0
      %1132 = vmatpush1.msra.mxu0 0.0
      %1133 = vmatprep.subr.mxu0 0.0
      %1134 = vmatpush1.msra.mxu0 0.0
      %1135 = vmatprep.subr.mxu0 0.0
      %1136 = vmatpush1.msra.mxu0 0.0
      %1137 = vmatprep.subr.mxu0 0.0
      %1138 = vmatpush1.msra.mxu0 0.0
      %1139 = vmatprep.subr.mxu0 0.0
      %1140 = vmatpush1.msra.mxu0 0.0
      %1141 = vmatprep.subr.mxu0 0.0
      %1142 = vmatpush1.msra.mxu0 0.0
      %1143 = vmatprep.subr.mxu0 0.0
      %1144 = vmatpush1.msra.mxu0 0.0
      %1145 = vmatprep.subr.mxu0 0.0
      %1146 = vmatpush1.msra.mxu0 0.0
      %1147 = vmatprep.subr.mxu0 0.0
      %1148 = vmatpush1.msra.mxu0 0.0
      %1149 = vmatprep.subr.mxu0 0.0
      %1150 = vmatpush1.msra.mxu0 0.0
      %1151 = vmatprep.subr.mxu0 0.0
      %1152 = vmatpush1.msra.mxu0 0.0
      %1153 = vmatprep.subr.mxu0 0.0
      %1154 = vmatpush1.msra.mxu0 0.0
      %1155 = vmatprep.subr.mxu0 0.0
      %1156 = vmatpush1.msra.mxu0 0.0
      %1157 = vmatprep.subr.mxu0 0.0
      %1158 = vmatpush1.msra.mxu0 0.0
      %1159 = vmatprep.subr.mxu0 0.0
      %1160 = vmatpush1.msra.mxu0 0.0
      %1161 = vmatprep.subr.mxu0 0.0
      %1162 = vmatpush1.msra.mxu0 0.0
      %1163 = vmatprep.subr.mxu0 0.0
      %1164 = vmatpush1.msra.mxu0 0.0
      %1165 = vmatprep.subr.mxu0 0.0
      %1166 = vmatpush1.msra.mxu0 0.0
      %1167 = vmatprep.subr.mxu0 0.0
      %1168 = vmatpush1.msra.mxu0 0.0
      %1169 = vmatprep.subr.mxu0 0.0
      %1170 = vmatpush1.msra.mxu0 0.0
      %1171 = vmatprep.subr.mxu0 0.0
      %1172 = vmatpush1.msra.mxu0 0.0
      %1173 = vmatprep.subr.mxu0 0.0
      %1174 = vmatpush1.msra.mxu0 0.0
      %1175 = vmatprep.subr.mxu0 0.0
      %1176 = vmatpush1.msra.mxu0 0.0
      %1177 = vmatprep.subr.mxu0 0.0
      %1178 = vmatpush1.msra.mxu0 0.0
      %1179 = vmatprep.subr.mxu0 0.0
      %1180 = vmatpush1.msra.mxu0 0.0
      %1181 = vmatprep.subr.mxu0 0.0
      %1182 = vmatpush1.msra.mxu0 0.0
      %1183 = vmatprep.subr.mxu0 0.0
      %1184 = vmatpush1.msra.mxu0 0.0
      %1185 = vmatprep.subr.mxu0 0.0
      %1186 = vmatpush1.msra.mxu0 0.0
      %1187 = vmatprep.subr.mxu0 0.0
      %1188 = vmatpush1.msra.mxu0 0.0
      %1189 = vmatprep.mubr.f32.mxu0 0.0
      %1190 = vmatmul.mubr.f32.gmra.mrb[0].mxu0 %v1123
      %v1191 = vpop.f32.mrb[0].mxu0
      %v1192 = vadd.f32 %v1121, %v1191
      %v1193 = vpop.f32.mrb[0].mxu0
      %1194 = vdwg.mxu0
      %1195 = vst.msk [vmem:[#allocation7 + $0x4] sm:$0x1] %vm750, %v1192
      %v1196 = vld [vmem:[#allocation4 + $0x5] sm:$0x1]
      %v1197 = vld [vmem:[#allocation3 + $0x5] sm:$0x1]
      %v1198 = vld [vmem:[#allocation5 + $0x5] sm:$0x1]
      %v1199 = vld [vmem:[#allocation6 + $0x5] sm:$0x1]
      %v1200 = vlaneseq
      %v1201 = vshrl.u32 %v1200, 7
      %v1202 = vsub.s32 0, %v1201
      %v1203 = vrot.slane %v1196, %v1202
      %v1204 = vmul.f32 %v1203, %v637
      %v1205 = vmul.f32 %v1203, %v638
      %v1206 = vmul.f32 %v1204, 1.442695
      %v1207 = vpow.pop %v1206
      %v1208 = vmul.f32 %v1205, 1.442695
      %v1209 = vpow.pop %v1208
      %v1210 = vlaneseq
      %v1211 = vshrl.u32 %v1210, 7
      %v1212 = vsub.s32 0, %v1211
      %v1213 = vrot.slane %v1198, %v1212
      %1215 = vbcast.lane.b32.xlu0 %v1213, 256
      %v1216 = vpop.permute.xlu0 %1215
      %s1218 = sor.u32 256, 8
      %1219 = vbcast.lane.b32.xlu0 %v1213, %s1218
      %v1220 = vpop.permute.xlu0 %1219
      %v1221 = vmul.f32 %v1196, %v1197
      %v1222 = vlaneseq
      %v1223 = vshrl.u32 %v1222, 7
      %v1224 = vsub.s32 0, %v1223
      %v1225 = vrot.slane %v1221, %v1224
      %v1226 = vmul.f32 %v1216, %v1225
      %v1227 = vmul.f32 %v1220, %v1225
      %v1228 = vmul.f32 %v1207, %v1119
      %v1229 = vmul.f32 %v1209, %v1120
      %v1230 = vadd.f32 %v1228, %v1226
      %v1231 = vadd.f32 %v1229, %v1227
      %v1232 = vmul.f32 %v639, %v1197
      %v1234 = vsel %vm625, %v1199, 0
      %1236 = vmatprep.subr.mxu0 0.0
      %1237 = vmatpush1.msra.mxu0 %v1230
      %1238 = vmatprep.subr.mxu0 0.0
      %1239 = vmatpush1.msra.mxu0 %v1231
      %1240 = vmatprep.subr.mxu0 0.0
      %1241 = vmatpush1.msra.mxu0 0.0
      %1242 = vmatprep.subr.mxu0 0.0
      %1243 = vmatpush1.msra.mxu0 0.0
      %1244 = vmatprep.subr.mxu0 0.0
      %1245 = vmatpush1.msra.mxu0 0.0
      %1246 = vmatprep.subr.mxu0 0.0
      %1247 = vmatpush1.msra.mxu0 0.0
      %1248 = vmatprep.subr.mxu0 0.0
      %1249 = vmatpush1.msra.mxu0 0.0
      %1250 = vmatprep.subr.mxu0 0.0
      %1251 = vmatpush1.msra.mxu0 0.0
      %1252 = vmatprep.subr.mxu0 0.0
      %1253 = vmatpush1.msra.mxu0 0.0
      %1254 = vmatprep.subr.mxu0 0.0
      %1255 = vmatpush1.msra.mxu0 0.0
      %1256 = vmatprep.subr.mxu0 0.0
      %1257 = vmatpush1.msra.mxu0 0.0
      %1258 = vmatprep.subr.mxu0 0.0
      %1259 = vmatpush1.msra.mxu0 0.0
      %1260 = vmatprep.subr.mxu0 0.0
      %1261 = vmatpush1.msra.mxu0 0.0
      %1262 = vmatprep.subr.mxu0 0.0
      %1263 = vmatpush1.msra.mxu0 0.0
      %1264 = vmatprep.subr.mxu0 0.0
      %1265 = vmatpush1.msra.mxu0 0.0
      %1266 = vmatprep.subr.mxu0 0.0
      %1267 = vmatpush1.msra.mxu0 0.0
      %1268 = vmatprep.subr.mxu0 0.0
      %1269 = vmatpush1.msra.mxu0 0.0
      %1270 = vmatprep.subr.mxu0 0.0
      %1271 = vmatpush1.msra.mxu0 0.0
      %1272 = vmatprep.subr.mxu0 0.0
      %1273 = vmatpush1.msra.mxu0 0.0
      %1274 = vmatprep.subr.mxu0 0.0
      %1275 = vmatpush1.msra.mxu0 0.0
      %1276 = vmatprep.subr.mxu0 0.0
      %1277 = vmatpush1.msra.mxu0 0.0
      %1278 = vmatprep.subr.mxu0 0.0
      %1279 = vmatpush1.msra.mxu0 0.0
      %1280 = vmatprep.subr.mxu0 0.0
      %1281 = vmatpush1.msra.mxu0 0.0
      %1282 = vmatprep.subr.mxu0 0.0
      %1283 = vmatpush1.msra.mxu0 0.0
      %1284 = vmatprep.subr.mxu0 0.0
      %1285 = vmatpush1.msra.mxu0 0.0
      %1286 = vmatprep.subr.mxu0 0.0
      %1287 = vmatpush1.msra.mxu0 0.0
      %1288 = vmatprep.subr.mxu0 0.0
      %1289 = vmatpush1.msra.mxu0 0.0
      %1290 = vmatprep.subr.mxu0 0.0
      %1291 = vmatpush1.msra.mxu0 0.0
      %1292 = vmatprep.subr.mxu0 0.0
      %1293 = vmatpush1.msra.mxu0 0.0
      %1294 = vmatprep.subr.mxu0 0.0
      %1295 = vmatpush1.msra.mxu0 0.0
      %1296 = vmatprep.subr.mxu0 0.0
      %1297 = vmatpush1.msra.mxu0 0.0
      %1298 = vmatprep.subr.mxu0 0.0
      %1299 = vmatpush1.msra.mxu0 0.0
      %1300 = vmatprep.mubr.f32.mxu0 0.0
      %1301 = vmatmul.mubr.f32.gmra.mrb[0].mxu0 %v1234
      %v1302 = vpop.f32.mrb[0].mxu0
      %v1303 = vadd.f32 %v1232, %v1302
      %v1304 = vpop.f32.mrb[0].mxu0
      %1305 = vdwg.mxu0
      %1306 = vst.msk [vmem:[#allocation7 + $0x5] sm:$0x1] %vm750, %v1303
      %v1307 = vld [vmem:[#allocation4 + $0x6] sm:$0x1]
      %v1308 = vld [vmem:[#allocation3 + $0x6] sm:$0x1]
      %v1309 = vld [vmem:[#allocation5 + $0x6] sm:$0x1]
      %v1310 = vld [vmem:[#allocation6 + $0x6] sm:$0x1]
      %v1311 = vlaneseq
      %v1312 = vshrl.u32 %v1311, 7
      %v1313 = vsub.s32 0, %v1312
      %v1314 = vrot.slane %v1307, %v1313
      %v1315 = vmul.f32 %v1314, %v637
      %v1316 = vmul.f32 %v1314, %v638
      %v1317 = vmul.f32 %v1315, 1.442695
      %v1318 = vpow.pop %v1317
      %v1319 = vmul.f32 %v1316, 1.442695
      %v1320 = vpow.pop %v1319
      %v1321 = vlaneseq
      %v1322 = vshrl.u32 %v1321, 7
      %v1323 = vsub.s32 0, %v1322
      %v1324 = vrot.slane %v1309, %v1323
      %1326 = vbcast.lane.b32.xlu0 %v1324, 256
      %v1327 = vpop.permute.xlu0 %1326
      %s1329 = sor.u32 256, 8
      %1330 = vbcast.lane.b32.xlu0 %v1324, %s1329
      %v1331 = vpop.permute.xlu0 %1330
      %v1332 = vmul.f32 %v1307, %v1308
      %v1333 = vlaneseq
      %v1334 = vshrl.u32 %v1333, 7
      %v1335 = vsub.s32 0, %v1334
      %v1336 = vrot.slane %v1332, %v1335
      %v1337 = vmul.f32 %v1327, %v1336
      %v1338 = vmul.f32 %v1331, %v1336
      %v1339 = vmul.f32 %v1318, %v1230
      %v1340 = vmul.f32 %v1320, %v1231
      %v1341 = vadd.f32 %v1339, %v1337
      %v1342 = vadd.f32 %v1340, %v1338
      %v1343 = vmul.f32 %v639, %v1308
      %v1345 = vsel %vm625, %v1310, 0
      %1347 = vmatprep.subr.mxu0 0.0
      %1348 = vmatpush1.msra.mxu0 %v1341
      %1349 = vmatprep.subr.mxu0 0.0
      %1350 = vmatpush1.msra.mxu0 %v1342
      %1351 = vmatprep.subr.mxu0 0.0
      %1352 = vmatpush1.msra.mxu0 0.0
      %1353 = vmatprep.subr.mxu0 0.0
      %1354 = vmatpush1.msra.mxu0 0.0
      %1355 = vmatprep.subr.mxu0 0.0
      %1356 = vmatpush1.msra.mxu0 0.0
      %1357 = vmatprep.subr.mxu0 0.0
      %1358 = vmatpush1.msra.mxu0 0.0
      %1359 = vmatprep.subr.mxu0 0.0
      %1360 = vmatpush1.msra.mxu0 0.0
      %1361 = vmatprep.subr.mxu0 0.0
      %1362 = vmatpush1.msra.mxu0 0.0
      %1363 = vmatprep.subr.mxu0 0.0
      %1364 = vmatpush1.msra.mxu0 0.0
      %1365 = vmatprep.subr.mxu0 0.0
      %1366 = vmatpush1.msra.mxu0 0.0
      %1367 = vmatprep.subr.mxu0 0.0
      %1368 = vmatpush1.msra.mxu0 0.0
      %1369 = vmatprep.subr.mxu0 0.0
      %1370 = vmatpush1.msra.mxu0 0.0
      %1371 = vmatprep.subr.mxu0 0.0
      %1372 = vmatpush1.msra.mxu0 0.0
      %1373 = vmatprep.subr.mxu0 0.0
      %1374 = vmatpush1.msra.mxu0 0.0
      %1375 = vmatprep.subr.mxu0 0.0
      %1376 = vmatpush1.msra.mxu0 0.0
      %1377 = vmatprep.subr.mxu0 0.0
      %1378 = vmatpush1.msra.mxu0 0.0
      %1379 = vmatprep.subr.mxu0 0.0
      %1380 = vmatpush1.msra.mxu0 0.0
      %1381 = vmatprep.subr.mxu0 0.0
      %1382 = vmatpush1.msra.mxu0 0.0
      %1383 = vmatprep.subr.mxu0 0.0
      %1384 = vmatpush1.msra.mxu0 0.0
      %1385 = vmatprep.subr.mxu0 0.0
      %1386 = vmatpush1.msra.mxu0 0.0
      %1387 = vmatprep.subr.mxu0 0.0
      %1388 = vmatpush1.msra.mxu0 0.0
      %1389 = vmatprep.subr.mxu0 0.0
      %1390 = vmatpush1.msra.mxu0 0.0
      %1391 = vmatprep.subr.mxu0 0.0
      %1392 = vmatpush1.msra.mxu0 0.0
      %1393 = vmatprep.subr.mxu0 0.0
      %1394 = vmatpush1.msra.mxu0 0.0
      %1395 = vmatprep.subr.mxu0 0.0
      %1396 = vmatpush1.msra.mxu0 0.0
      %1397 = vmatprep.subr.mxu0 0.0
      %1398 = vmatpush1.msra.mxu0 0.0
      %1399 = vmatprep.subr.mxu0 0.0
      %1400 = vmatpush1.msra.mxu0 0.0
      %1401 = vmatprep.subr.mxu0 0.0
      %1402 = vmatpush1.msra.mxu0 0.0
      %1403 = vmatprep.subr.mxu0 0.0
      %1404 = vmatpush1.msra.mxu0 0.0
      %1405 = vmatprep.subr.mxu0 0.0
      %1406 = vmatpush1.msra.mxu0 0.0
      %1407 = vmatprep.subr.mxu0 0.0
      %1408 = vmatpush1.msra.mxu0 0.0
      %1409 = vmatprep.subr.mxu0 0.0
      %1410 = vmatpush1.msra.mxu0 0.0
      %1411 = vmatprep.mubr.f32.mxu0 0.0
      %1412 = vmatmul.mubr.f32.gmra.mrb[0].mxu0 %v1345
      %v1413 = vpop.f32.mrb[0].mxu0
      %v1414 = vadd.f32 %v1343, %v1413
      %v1415 = vpop.f32.mrb[0].mxu0
      %1416 = vdwg.mxu0
      %1417 = vst.msk [vmem:[#allocation7 + $0x6] sm:$0x1] %vm750, %v1414
      %v1418 = vld [vmem:[#allocation4 + $0x7] sm:$0x1]
      %v1419 = vld [vmem:[#allocation3 + $0x7] sm:$0x1]
      %v1420 = vld [vmem:[#allocation5 + $0x7] sm:$0x1]
      %v1421 = vld [vmem:[#allocation6 + $0x7] sm:$0x1]
      %v1422 = vlaneseq
      %v1423 = vshrl.u32 %v1422, 7
      %v1424 = vsub.s32 0, %v1423
      %v1425 = vrot.slane %v1418, %v1424
      %v1426 = vmul.f32 %v1425, %v637
      %v1427 = vmul.f32 %v1425, %v638
      %v1428 = vmul.f32 %v1426, 1.442695
      %v1429 = vpow.pop %v1428
      %v1430 = vmul.f32 %v1427, 1.442695
      %v1431 = vpow.pop %v1430
      %v1432 = vlaneseq
      %v1433 = vshrl.u32 %v1432, 7
      %v1434 = vsub.s32 0, %v1433
      %v1435 = vrot.slane %v1420, %v1434
      %1437 = vbcast.lane.b32.xlu0 %v1435, 256
      %v1438 = vpop.permute.xlu0 %1437
      %s1440 = sor.u32 256, 8
      %1441 = vbcast.lane.b32.xlu0 %v1435, %s1440
      %v1442 = vpop.permute.xlu0 %1441
      %v1443 = vmul.f32 %v1418, %v1419
      %v1444 = vlaneseq
      %v1445 = vshrl.u32 %v1444, 7
      %v1446 = vsub.s32 0, %v1445
      %v1447 = vrot.slane %v1443, %v1446
      %v1448 = vmul.f32 %v1438, %v1447
      %v1449 = vmul.f32 %v1442, %v1447
      %v1450 = vmul.f32 %v1429, %v1341
      %v1451 = vmul.f32 %v1431, %v1342
      %v1452 = vadd.f32 %v1450, %v1448
      %v1453 = vadd.f32 %v1451, %v1449
      %v1454 = vmul.f32 %v639, %v1419
      %v1456 = vsel %vm625, %v1421, 0
      %1458 = vmatprep.subr.mxu0 0.0
      %1459 = vmatpush1.msra.mxu0 %v1452
      %1460 = vmatprep.subr.mxu0 0.0
      %1461 = vmatpush1.msra.mxu0 %v1453
      %1462 = vmatprep.subr.mxu0 0.0
      %1463 = vmatpush1.msra.mxu0 0.0
      %1464 = vmatprep.subr.mxu0 0.0
      %1465 = vmatpush1.msra.mxu0 0.0
      %1466 = vmatprep.subr.mxu0 0.0
      %1467 = vmatpush1.msra.mxu0 0.0
      %1468 = vmatprep.subr.mxu0 0.0
      %1469 = vmatpush1.msra.mxu0 0.0
      %1470 = vmatprep.subr.mxu0 0.0
      %1471 = vmatpush1.msra.mxu0 0.0
      %1472 = vmatprep.subr.mxu0 0.0
      %1473 = vmatpush1.msra.mxu0 0.0
      %1474 = vmatprep.subr.mxu0 0.0
      %1475 = vmatpush1.msra.mxu0 0.0
      %1476 = vmatprep.subr.mxu0 0.0
      %1477 = vmatpush1.msra.mxu0 0.0
      %1478 = vmatprep.subr.mxu0 0.0
      %1479 = vmatpush1.msra.mxu0 0.0
      %1480 = vmatprep.subr.mxu0 0.0
      %1481 = vmatpush1.msra.mxu0 0.0
      %1482 = vmatprep.subr.mxu0 0.0
      %1483 = vmatpush1.msra.mxu0 0.0
      %1484 = vmatprep.subr.mxu0 0.0
      %1485 = vmatpush1.msra.mxu0 0.0
      %1486 = vmatprep.subr.mxu0 0.0
      %1487 = vmatpush1.msra.mxu0 0.0
      %1488 = vmatprep.subr.mxu0 0.0
      %1489 = vmatpush1.msra.mxu0 0.0
      %1490 = vmatprep.subr.mxu0 0.0
      %1491 = vmatpush1.msra.mxu0 0.0
      %1492 = vmatprep.subr.mxu0 0.0
      %1493 = vmatpush1.msra.mxu0 0.0
      %1494 = vmatprep.subr.mxu0 0.0
      %1495 = vmatpush1.msra.mxu0 0.0
      %1496 = vmatprep.subr.mxu0 0.0
      %1497 = vmatpush1.msra.mxu0 0.0
      %1498 = vmatprep.subr.mxu0 0.0
      %1499 = vmatpush1.msra.mxu0 0.0
      %1500 = vmatprep.subr.mxu0 0.0
      %1501 = vmatpush1.msra.mxu0 0.0
      %1502 = vmatprep.subr.mxu0 0.0
      %1503 = vmatpush1.msra.mxu0 0.0
      %1504 = vmatprep.subr.mxu0 0.0
      %1505 = vmatpush1.msra.mxu0 0.0
      %1506 = vmatprep.subr.mxu0 0.0
      %1507 = vmatpush1.msra.mxu0 0.0
      %1508 = vmatprep.subr.mxu0 0.0
      %1509 = vmatpush1.msra.mxu0 0.0
      %1510 = vmatprep.subr.mxu0 0.0
      %1511 = vmatpush1.msra.mxu0 0.0
      %1512 = vmatprep.subr.mxu0 0.0
      %1513 = vmatpush1.msra.mxu0 0.0
      %1514 = vmatprep.subr.mxu0 0.0
      %1515 = vmatpush1.msra.mxu0 0.0
      %1516 = vmatprep.subr.mxu0 0.0
      %1517 = vmatpush1.msra.mxu0 0.0
      %1518 = vmatprep.subr.mxu0 0.0
      %1519 = vmatpush1.msra.mxu0 0.0
      %1520 = vmatprep.subr.mxu0 0.0
      %1521 = vmatpush1.msra.mxu0 0.0
      %1522 = vmatprep.mubr.f32.mxu0 0.0
      %1523 = vmatmul.mubr.f32.gmra.mrb[0].mxu0 %v1456
      %v1524 = vpop.f32.mrb[0].mxu0
      %v1525 = vadd.f32 %v1454, %v1524
      %v1526 = vpop.f32.mrb[0].mxu0
      %1527 = vdwg.mxu0
      %1528 = vst.msk [vmem:[#allocation7 + $0x7] sm:$0x1] %vm750, %v1525
      %v1529 = vld [vmem:[#allocation7] sm:$0xff]
      %v1530 = vsub.f32 0.0, %v448
      %v1531 = vmul.f32 %v1530, 1.442695
      %v1532 = vpow.pop %v1531
      %v1533 = vadd.f32 %v1532, 1.0
      %v1534 = vrcp.pop %v1533
      %v1535 = vmul.f32 %v448, %v1534
      %1537 = vrot.lane.b32.xlu0 %v1535, 64
      %v1538 = vpop.permute.xlu0 %1537
      %v1540 = vmul.f32 %v1529, %v1538
      %v1541 = vld [vmem:[%s9] sm:$0xff]
      %v1542 = vld [vmem:[%s9 + $0x8] sm:$0xff]
      %v1543 = vld [vmem:[%s9 + $0x10] sm:$0xff]
      %v1544 = vld [vmem:[%s9 + $0x18] sm:$0xff]
      %v1545 = vld [vmem:[%s9 + $0x20] sm:$0xff]
      %v1546 = vld [vmem:[%s9 + $0x28] sm:$0xff]
      %v1547 = vld [vmem:[%s9 + $0x30] sm:$0xff]
      %v1548 = vld [vmem:[%s9 + $0x38] sm:$0xff]
      %v1550 = vsel %vm453, %v1540, 0
      %1552 = vmatprep.subr.mxu0 0.0
      %1553 = vmatpush1.msra.mxu0 %v1541
      %1554 = vmatprep.subr.mxu0 0.0
      %1555 = vmatpush1.msra.mxu0 %v1542
      %1556 = vmatprep.subr.mxu0 0.0
      %1557 = vmatpush1.msra.mxu0 %v1543
      %1558 = vmatprep.subr.mxu0 0.0
      %1559 = vmatpush1.msra.mxu0 %v1544
      %1560 = vmatprep.subr.mxu0 0.0
      %1561 = vmatpush1.msra.mxu0 %v1545
      %1562 = vmatprep.subr.mxu0 0.0
      %1563 = vmatpush1.msra.mxu0 %v1546
      %1564 = vmatprep.subr.mxu0 0.0
      %1565 = vmatpush1.msra.mxu0 %v1547
      %1566 = vmatprep.subr.mxu0 0.0
      %1567 = vmatpush1.msra.mxu0 %v1548
      %1568 = vmatprep.subr.mxu0 0.0
      %1569 = vmatpush1.msra.mxu0 0.0
      %1570 = vmatprep.subr.mxu0 0.0
      %1571 = vmatpush1.msra.mxu0 0.0
      %1572 = vmatprep.subr.mxu0 0.0
      %1573 = vmatpush1.msra.mxu0 0.0
      %1574 = vmatprep.subr.mxu0 0.0
      %1575 = vmatpush1.msra.mxu0 0.0
      %1576 = vmatprep.subr.mxu0 0.0
      %1577 = vmatpush1.msra.mxu0 0.0
      %1578 = vmatprep.subr.mxu0 0.0
      %1579 = vmatpush1.msra.mxu0 0.0
      %1580 = vmatprep.subr.mxu0 0.0
      %1581 = vmatpush1.msra.mxu0 0.0
      %1582 = vmatprep.subr.mxu0 0.0
      %1583 = vmatpush1.msra.mxu0 0.0
      %1584 = vmatprep.subr.mxu0 0.0
      %1585 = vmatpush1.msra.mxu0 0.0
      %1586 = vmatprep.subr.mxu0 0.0
      %1587 = vmatpush1.msra.mxu0 0.0
      %1588 = vmatprep.subr.mxu0 0.0
      %1589 = vmatpush1.msra.mxu0 0.0
      %1590 = vmatprep.subr.mxu0 0.0
      %1591 = vmatpush1.msra.mxu0 0.0
      %1592 = vmatprep.subr.mxu0 0.0
      %1593 = vmatpush1.msra.mxu0 0.0
      %1594 = vmatprep.subr.mxu0 0.0
      %1595 = vmatpush1.msra.mxu0 0.0
      %1596 = vmatprep.subr.mxu0 0.0
      %1597 = vmatpush1.msra.mxu0 0.0
      %1598 = vmatprep.subr.mxu0 0.0
      %1599 = vmatpush1.msra.mxu0 0.0
      %1600 = vmatprep.subr.mxu0 0.0
      %1601 = vmatpush1.msra.mxu0 0.0
      %1602 = vmatprep.subr.mxu0 0.0
      %1603 = vmatpush1.msra.mxu0 0.0
      %1604 = vmatprep.subr.mxu0 0.0
      %1605 = vmatpush1.msra.mxu0 0.0
      %1606 = vmatprep.subr.mxu0 0.0
      %1607 = vmatpush1.msra.mxu0 0.0
      %1608 = vmatprep.subr.mxu0 0.0
      %1609 = vmatpush1.msra.mxu0 0.0
      %1610 = vmatprep.subr.mxu0 0.0
      %1611 = vmatpush1.msra.mxu0 0.0
      %1612 = vmatprep.subr.mxu0 0.0
      %1613 = vmatpush1.msra.mxu0 0.0
      %1614 = vmatprep.subr.mxu0 0.0
      %1615 = vmatpush1.msra.mxu0 0.0
      %1616 = vmatprep.mubr.f32.mxu0 0.0
      %1617 = vmatmul.mubr.f32.gmra.mrb[0].mxu0 %v1550
      %v1618 = vpop.f32.mrb[0].mxu0
      %v1619 = vadd.f32 0.0, %v1618
      %v1620 = vpop.f32.mrb[0].mxu0
      %1621 = vdwg.mxu0
      %v1622 = vadd.f32 %v355, %v1619
      %1623 = vst.msk [vmem:[%s354] sm:$0xff] %vm357, %v1622
      %p1624 = scmp.lt.s32.totalorder %s21, 1
      %s1625 = scalar_select %p1624, %s21, 1
      %s1626 = smul.addr %s1625, 8
      %s1627 = scalar_lea.vmem %s10, %s1626
      // Predicated region
      $region61: #{net_forward.5} parent=59 // pred_check
        %p1628 = pneg %p254
      $region62: #{net_forward.5} parent=59 // pred_check_branch
        %1630 = sbr.rel (%p1628) target = $region64
      $region63: #{net_forward.5} parent=59 // pred_region
        _
      $region64: #{net_forward.5} parent=59 // pred_fallthru
        _
    $region60: #{net_forward.5} parent=5 // pred_fallthru
      _
    %p1631 = scmp.le.s32.totalorder 2, %s16
    // Predicated region
    $region65: #{net_forward.5} parent=5 // pred_check
      %p1632 = pneg %p1631
    $region66: #{net_forward.5} parent=5 // pred_check_branch
      %1634 = sbr.rel (%p1632) target = $region68
    $region67: #{net_forward.5} parent=5 // pred_region
      %s1635 = ssub.s32 %s16, 2
      // Predicated region
      $region69: #{net_forward.5} parent=67 // pred_check
        %p1636 = pneg %p260
      $region70: #{net_forward.5} parent=67 // pred_check_branch
        %1638 = sbr.rel (%p1636) target = $region72
      $region71: #{net_forward.5} parent=67 // pred_region
        %p1639 = scmp.lt.s32.totalorder %s22, 1
        %s1640 = scalar_select %p1639, %s22, 1
        %s1641 = smul.addr %s1640, 8
        %s1642 = scalar_lea.vmem %s10, %s1641
      $region72: #{net_forward.5} parent=67 // pred_fallthru
        _
    $region68: #{net_forward.5} parent=5 // pred_fallthru
      _
  $region6: #{net_forward.5} parent=0 // loop_footer
    %s20 = sadd.s32 1, %s16
  $region7: #{net_forward.5} parent=0 // loop_footer_branch
    %15 = sbr.rel target = $region3
  $region8: #{net_forward.5} parent=0 // loop_exit
    _

</llo_original>
